<compile_context>
chip_gen: v5e
topology: v5e:2x2
jax: 0.10.0
libtpu: 0.0.40
codegen_flags: <defaults>
</compile_context>

<pallas_src>
import functools

import jax
import jax.numpy as jnp
import numpy as np
from jax.experimental import pallas as pl
from jax.experimental.pallas import tpu as pltpu

EPS = 1e-6
K = 7            # depthwise kernel size (DWConv1 is 7x7)
P = K // 2       # 'same' padding = 3


# ----------------------------- Pallas kernel ------------------------------ #

def sgab_kernel(x_ref, pk_ref, w1_ref, dww_ref, w2_ref, vmask_ref, out_ref,
                *, H, W):
    C = x_ref.shape[1]
    HW = H * W
    # vreg-aligned zero halo wide enough for P rows + P columns of reach.
    lpad = ((P * W + P + 127) // 128) * 128

    x = x_ref[0]                                   # (C, HW), spatial on lanes
    shortcut = x

    # Packed small per-channel params: one (C, 7) load, column slices.
    pk = pk_ref[...]
    ln_w, ln_b = pk[:, 0:1], pk[:, 1:2]
    b1a, b1x = pk[:, 2:3], pk[:, 3:4]
    dw_b, b2, scale = pk[:, 4:5], pk[:, 5:6], pk[:, 6:7]

    # LayerNorm (channels_first): normalize over the channel (sublane) axis.
    u = jnp.mean(x, axis=0, keepdims=True)
    xc = x - u
    s = jnp.mean(xc * xc, axis=0, keepdims=True)
    xn = xc * jax.lax.rsqrt(s + EPS)               # EUP rsqrt, no VPU divide
    xn = xn * ln_w + ln_b

    # Conv1 (1x1, C -> 2C): one MXU matmul at default precision.
    y = jnp.dot(w1_ref[...], xn, preferred_element_type=jnp.float32)
    a = y[:C] + b1a                                # (C, HW)
    xg = y[C:] + b1x                               # (C, HW)

    # Depthwise 7x7 'same' conv on `a`, entirely in registers.
    # padded = [lpad zeros | HW data | lpad zeros]; segments are multiples of
    # 128 lanes, so the concat is vreg-aligned (no lane shifts here).
    zeros = jnp.zeros((C, lpad), jnp.float32)
    padded = jnp.concatenate([zeros, a, zeros], axis=1)   # (C, lpad+HW+lpad)

    wdw = dww_ref[...]                              # (C, K*K) depthwise taps
    acc = jnp.zeros((C, HW), jnp.float32)
    for kv in range(K):                             # horizontal tap offset
        part = jnp.zeros((C, HW), jnp.float32)
        for ku in range(K):                         # vertical tap offset
            start = lpad + (ku - P) * W + (kv - P)  # static lane offset
            win = padded[:, start:start + HW]       # in-register static slice
            tap = wdw[:, ku * K + kv:ku * K + kv + 1]   # (C, 1)
            part = part + tap * win
        if kv != P:                                 # zero W-edge wrap lanes
            part = part * vmask_ref[kv:kv + 1, :]
        acc = acc + part
    dwout = acc + dw_b

    # Gate, Conv2 (1x1, C -> C) as MXU matmul, scale, residual.
    g = xg * dwout
    z = jnp.dot(w2_ref[...], g, preferred_element_type=jnp.float32) + b2
    out_ref[0] = z * scale + shortcut


def run_sgab(x_flat, kparams, H, W):
    B, C, HW = x_flat.shape
    assert HW == H * W

    def _const_spec(arr):
        nd = arr.ndim
        return pl.BlockSpec(arr.shape, lambda b, _nd=nd: (0,) * _nd)

    x_spec = pl.BlockSpec((1, C, HW), lambda b: (b, 0, 0))
    out_spec = pl.BlockSpec((1, C, HW), lambda b: (b, 0, 0))

    grid_spec = pltpu.PrefetchScalarGridSpec(
        num_scalar_prefetch=0,
        grid=(B,),
        in_specs=[x_spec] + [_const_spec(p) for p in kparams],
        out_specs=out_spec,
    )
    fn = pl.pallas_call(
        functools.partial(sgab_kernel, H=H, W=W),
        out_shape=jax.ShapeDtypeStruct((B, C, HW), jnp.float32),
        grid_spec=grid_spec,
        compiler_params=pltpu.CompilerParams(
            dimension_semantics=("parallel",)),
    )
    return fn(x_flat, *kparams)


# ----------------------- parameter setup (plain JAX) ----------------------- #

def make_params(key, C):
    """Deterministic synthetic parameters in PyTorch layouts."""
    keys = iter(jax.random.split(key, 16))

    def w(shape, scl=0.1):
        return scl * jax.random.normal(next(keys), shape, jnp.float32)

    p = {}
    p["ln_w"] = 1.0 + w((C,))
    p["ln_b"] = w((C,))
    p["c1_w"] = w((2 * C, C, 1, 1))
    p["c1_b"] = w((2 * C,))
    p["dw_w"] = w((C, 1, K, K))
    p["dw_b"] = w((C,))
    p["c2_w"] = w((C, C, 1, 1))
    p["c2_b"] = w((C,))
    p["scale"] = 0.5 + w((1, C, 1, 1))   # nonzero so the test is meaningful
    return p


def to_kernel_params(p, H, W):
    """Convert torch-layout params to the kernel's (C on sublanes) layouts."""
    C = p["ln_w"].shape[0]
    HW = H * W

    # Pack the six small per-channel vectors into one (C, 7) array.
    packed = jnp.stack([
        p["ln_w"], p["ln_b"],
        p["c1_b"][:C], p["c1_b"][C:],
        p["dw_b"], p["c2_b"],
        p["scale"].reshape(-1),
    ], axis=1).astype(jnp.float32)

    # Column-validity masks for the 7 horizontal tap offsets dv = -3..3,
    # computed once on the host (handles W-edge wrap of the flattened layout).
    colidx = np.arange(HW) % W
    vmask = np.zeros((K, HW), np.float32)
    for kv in range(K):
        dv = kv - P
        vmask[kv] = ((colidx + dv >= 0) & (colidx + dv < W)).astype(np.float32)

    return [
        packed,                                  # (C, 7)
        p["c1_w"][:, :, 0, 0],                   # (2C, C)
        p["dw_w"][:, 0].reshape(C, K * K),       # (C, 49)
        p["c2_w"][:, :, 0, 0],                   # (C, C)
        jnp.asarray(vmask),                      # (K, HW)
    ]


# ------------------------- pure-JAX reference (NCHW) ------------------------ #

def _conv2d(x, w, b, padding=0, groups=1):
    out = jax.lax.conv_general_dilated(
        x, w, window_strides=(1, 1),
        padding=[(padding, padding), (padding, padding)],
        dimension_numbers=("NCHW", "OIHW", "NCHW"),
        feature_group_count=groups,
        precision=jax.lax.Precision.HIGHEST)
    return out + b[None, :, None, None]


def reference_forward(x, p):
    C = x.shape[1]
    shortcut = x
    u = x.mean(1, keepdims=True)
    s = ((x - u) ** 2).mean(1, keepdims=True)
    xn = (x - u) / jnp.sqrt(s + EPS)
    xn = p["ln_w"][None, :, None, None] * xn + p["ln_b"][None, :, None, None]
    y = _conv2d(xn, p["c1_w"], p["c1_b"])
    a, xg = y[:, :C], y[:, C:]
    dw = _conv2d(a, p["dw_w"], p["dw_b"], padding=P, groups=C)
    z = _conv2d(xg * dw, p["c2_w"], p["c2_b"])
    return z * p["scale"] + shortcut


# ----------------------------------- main ----------------------------------- #

if __name__ == "__main__":
    key = jax.random.PRNGKey(0)
    B, C, H, W = 2, 8, 16, 16
    k_x, k_p = jax.random.split(key)
    x_nchw = jax.random.normal(k_x, (B, C, H, W), jnp.float32)

    tparams = make_params(k_p, C)
    kparams = to_kernel_params(tparams, H, W)

    x_flat = x_nchw.reshape(B, C, H * W)   # spatial-on-lanes layout (pure reshape)
    out_flat = run_sgab(x_flat, kparams, H, W)
    out_nchw = out_flat.reshape(B, C, H, W)
    jax.block_until_ready(out_nchw)

    ref = reference_forward(x_nchw, tparams)
    # Tolerance accommodates default-precision (single-pass bf16) MXU matmuls
    # vs the HIGHEST-precision reference convs; C=8 contraction keeps the
    # error far below functional-bug magnitude.
    np.testing.assert_allclose(np.asarray(out_nchw), np.asarray(ref),
                               rtol=2e-3, atol=2e-3)
    print("KERNEL_OK")
</pallas_src>

<mosaic_0001>
module attributes {stable_mosaic.version = 11 : i64} {
  func.func @sgab_kernel(%arg0: i32, %arg1: memref<1x8x256xf32, #tpu.memory_space<vmem>>, %arg2: memref<8x7xf32, #tpu.memory_space<vmem>>, %arg3: memref<16x8xf32, #tpu.memory_space<vmem>>, %arg4: memref<8x49xf32, #tpu.memory_space<vmem>>, %arg5: memref<8x8xf32, #tpu.memory_space<vmem>>, %arg6: memref<7x256xf32, #tpu.memory_space<vmem>>, %arg7: memref<1x8x256xf32, #tpu.memory_space<vmem>>) attributes {dimension_semantics = [#tpu.dimension_semantics<parallel>], iteration_bounds = array<i64: 2>, scalar_prefetch = 0 : i64, scratch_operands = 0 : i64, tpu.core_type = #tpu.core_type<tc>, window_params = [{transform_indices = @transform_0, window_bounds = array<i64: 1, 8, 256>}, {pipeline_mode = #tpu.pipeline_mode<synchronous>, transform_indices = @transform_1, window_bounds = array<i64: 8, 7>}, {pipeline_mode = #tpu.pipeline_mode<synchronous>, transform_indices = @transform_2, window_bounds = array<i64: 16, 8>}, {pipeline_mode = #tpu.pipeline_mode<synchronous>, transform_indices = @transform_3, window_bounds = array<i64: 8, 49>}, {pipeline_mode = #tpu.pipeline_mode<synchronous>, transform_indices = @transform_4, window_bounds = array<i64: 8, 8>}, {pipeline_mode = #tpu.pipeline_mode<synchronous>, transform_indices = @transform_5, window_bounds = array<i64: 7, 256>}, {transform_indices = @transform_6, window_bounds = array<i64: 1, 8, 256>}]} {
    %c0 = arith.constant 0 : index
    %c0_0 = arith.constant 0 : index
    %c0_1 = arith.constant 0 : index
    %0 = vector.load %arg1[%c0, %c0_0, %c0_1] : memref<1x8x256xf32, #tpu.memory_space<vmem>>, vector<1x8x256xf32>
    %1 = vector.shape_cast %0 : vector<1x8x256xf32> to vector<8x256xf32>
    %c0_2 = arith.constant 0 : index
    %c0_3 = arith.constant 0 : index
    %2 = vector.load %arg2[%c0_2, %c0_3] : memref<8x7xf32, #tpu.memory_space<vmem>>, vector<8x7xf32>
    %3 = vector.extract_strided_slice %2 {offsets = [0, 0], sizes = [8, 1], strides = [1, 1]} : vector<8x7xf32> to vector<8x1xf32>
    %4 = vector.extract_strided_slice %2 {offsets = [0, 1], sizes = [8, 1], strides = [1, 1]} : vector<8x7xf32> to vector<8x1xf32>
    %5 = vector.extract_strided_slice %2 {offsets = [0, 2], sizes = [8, 1], strides = [1, 1]} : vector<8x7xf32> to vector<8x1xf32>
    %6 = vector.extract_strided_slice %2 {offsets = [0, 3], sizes = [8, 1], strides = [1, 1]} : vector<8x7xf32> to vector<8x1xf32>
    %7 = vector.extract_strided_slice %2 {offsets = [0, 4], sizes = [8, 1], strides = [1, 1]} : vector<8x7xf32> to vector<8x1xf32>
    %8 = vector.extract_strided_slice %2 {offsets = [0, 5], sizes = [8, 1], strides = [1, 1]} : vector<8x7xf32> to vector<8x1xf32>
    %9 = vector.extract_strided_slice %2 {offsets = [0, 6], sizes = [8, 1], strides = [1, 1]} : vector<8x7xf32> to vector<8x1xf32>
    %cst = arith.constant dense<0.000000e+00> : vector<256xf32>
    %10 = vector.multi_reduction <add>, %1, %cst [0] : vector<8x256xf32> to vector<256xf32>
    %11 = vector.shape_cast %10 : vector<256xf32> to vector<1x256xf32>
    %cst_4 = arith.constant 8.000000e+00 : f32
    %12 = vector.broadcast %cst_4 : f32 to vector<1x256xf32>
    %13 = arith.divf %11, %12 : vector<1x256xf32>
    %14 = vector.broadcast %13 : vector<1x256xf32> to vector<8x256xf32>
    %15 = arith.subf %1, %14 : vector<8x256xf32>
    %16 = arith.mulf %15, %15 : vector<8x256xf32>
    %cst_5 = arith.constant dense<0.000000e+00> : vector<256xf32>
    %17 = vector.multi_reduction <add>, %16, %cst_5 [0] : vector<8x256xf32> to vector<256xf32>
    %18 = vector.shape_cast %17 : vector<256xf32> to vector<1x256xf32>
    %cst_6 = arith.constant 8.000000e+00 : f32
    %19 = vector.broadcast %cst_6 : f32 to vector<1x256xf32>
    %20 = arith.divf %18, %19 : vector<1x256xf32>
    %cst_7 = arith.constant 9.99999997E-7 : f32
    %21 = vector.broadcast %cst_7 : f32 to vector<1x256xf32>
    %22 = arith.addf %20, %21 : vector<1x256xf32>
    %23 = math.rsqrt %22 : vector<1x256xf32>
    %24 = vector.broadcast %23 : vector<1x256xf32> to vector<8x256xf32>
    %25 = arith.mulf %15, %24 : vector<8x256xf32>
    %26 = vector.broadcast %3 : vector<8x1xf32> to vector<8x256xf32>
    %27 = arith.mulf %25, %26 : vector<8x256xf32>
    %28 = vector.broadcast %4 : vector<8x1xf32> to vector<8x256xf32>
    %29 = arith.addf %27, %28 : vector<8x256xf32>
    %c0_8 = arith.constant 0 : index
    %c0_9 = arith.constant 0 : index
    %30 = vector.load %arg3[%c0_8, %c0_9] : memref<16x8xf32, #tpu.memory_space<vmem>>, vector<16x8xf32>
    %cst_10 = arith.constant dense<0.000000e+00> : vector<16x256xf32>
    %31 = tpu.matmul %30, %29, %cst_10 {dimension_numbers = #tpu.dot_dimension_numbers<[1], [0], [0], [1], [0, 0, 1, 1], [], []>} : vector<16x8xf32>, vector<8x256xf32>, vector<16x256xf32> -> vector<16x256xf32>
    %32 = vector.extract_strided_slice %31 {offsets = [0, 0], sizes = [8, 256], strides = [1, 1]} : vector<16x256xf32> to vector<8x256xf32>
    %33 = vector.broadcast %5 : vector<8x1xf32> to vector<8x256xf32>
    %34 = arith.addf %32, %33 : vector<8x256xf32>
    %35 = vector.extract_strided_slice %31 {offsets = [8, 0], sizes = [8, 256], strides = [1, 1]} : vector<16x256xf32> to vector<8x256xf32>
    %36 = vector.broadcast %6 : vector<8x1xf32> to vector<8x256xf32>
    %37 = arith.addf %35, %36 : vector<8x256xf32>
    %cst_11 = arith.constant 0.000000e+00 : f32
    %38 = vector.broadcast %cst_11 : f32 to vector<8x128xf32>
    %39 = tpu.concatenate %38, %34, %38 in 1 : vector<8x128xf32>, vector<8x256xf32>, vector<8x128xf32> -> vector<8x512xf32>
    %c0_12 = arith.constant 0 : index
    %c0_13 = arith.constant 0 : index
    %40 = vector.load %arg4[%c0_12, %c0_13] : memref<8x49xf32, #tpu.memory_space<vmem>>, vector<8x49xf32>
    %cst_14 = arith.constant 0.000000e+00 : f32
    %41 = vector.broadcast %cst_14 : f32 to vector<8x256xf32>
    %cst_15 = arith.constant 0.000000e+00 : f32
    %42 = vector.broadcast %cst_15 : f32 to vector<8x256xf32>
    %43 = vector.extract_strided_slice %39 {offsets = [0, 77], sizes = [8, 256], strides = [1, 1]} : vector<8x512xf32> to vector<8x256xf32>
    %44 = vector.extract_strided_slice %40 {offsets = [0, 0], sizes = [8, 1], strides = [1, 1]} : vector<8x49xf32> to vector<8x1xf32>
    %45 = vector.broadcast %44 : vector<8x1xf32> to vector<8x256xf32>
    %46 = arith.mulf %45, %43 : vector<8x256xf32>
    %47 = arith.addf %42, %46 : vector<8x256xf32>
    %48 = vector.extract_strided_slice %39 {offsets = [0, 93], sizes = [8, 256], strides = [1, 1]} : vector<8x512xf32> to vector<8x256xf32>
    %49 = vector.extract_strided_slice %40 {offsets = [0, 7], sizes = [8, 1], strides = [1, 1]} : vector<8x49xf32> to vector<8x1xf32>
    %50 = vector.broadcast %49 : vector<8x1xf32> to vector<8x256xf32>
    %51 = arith.mulf %50, %48 : vector<8x256xf32>
    %52 = arith.addf %47, %51 : vector<8x256xf32>
    %53 = vector.extract_strided_slice %39 {offsets = [0, 109], sizes = [8, 256], strides = [1, 1]} : vector<8x512xf32> to vector<8x256xf32>
    %54 = vector.extract_strided_slice %40 {offsets = [0, 14], sizes = [8, 1], strides = [1, 1]} : vector<8x49xf32> to vector<8x1xf32>
    %55 = vector.broadcast %54 : vector<8x1xf32> to vector<8x256xf32>
    %56 = arith.mulf %55, %53 : vector<8x256xf32>
    %57 = arith.addf %52, %56 : vector<8x256xf32>
    %58 = vector.extract_strided_slice %39 {offsets = [0, 125], sizes = [8, 256], strides = [1, 1]} : vector<8x512xf32> to vector<8x256xf32>
    %59 = vector.extract_strided_slice %40 {offsets = [0, 21], sizes = [8, 1], strides = [1, 1]} : vector<8x49xf32> to vector<8x1xf32>
    %60 = vector.broadcast %59 : vector<8x1xf32> to vector<8x256xf32>
    %61 = arith.mulf %60, %58 : vector<8x256xf32>
    %62 = arith.addf %57, %61 : vector<8x256xf32>
    %63 = vector.extract_strided_slice %39 {offsets = [0, 141], sizes = [8, 256], strides = [1, 1]} : vector<8x512xf32> to vector<8x256xf32>
    %64 = vector.extract_strided_slice %40 {offsets = [0, 28], sizes = [8, 1], strides = [1, 1]} : vector<8x49xf32> to vector<8x1xf32>
    %65 = vector.broadcast %64 : vector<8x1xf32> to vector<8x256xf32>
    %66 = arith.mulf %65, %63 : vector<8x256xf32>
    %67 = arith.addf %62, %66 : vector<8x256xf32>
    %68 = vector.extract_strided_slice %39 {offsets = [0, 157], sizes = [8, 256], strides = [1, 1]} : vector<8x512xf32> to vector<8x256xf32>
    %69 = vector.extract_strided_slice %40 {offsets = [0, 35], sizes = [8, 1], strides = [1, 1]} : vector<8x49xf32> to vector<8x1xf32>
    %70 = vector.broadcast %69 : vector<8x1xf32> to vector<8x256xf32>
    %71 = arith.mulf %70, %68 : vector<8x256xf32>
    %72 = arith.addf %67, %71 : vector<8x256xf32>
    %73 = vector.extract_strided_slice %39 {offsets = [0, 173], sizes = [8, 256], strides = [1, 1]} : vector<8x512xf32> to vector<8x256xf32>
    %74 = vector.extract_strided_slice %40 {offsets = [0, 42], sizes = [8, 1], strides = [1, 1]} : vector<8x49xf32> to vector<8x1xf32>
    %75 = vector.broadcast %74 : vector<8x1xf32> to vector<8x256xf32>
    %76 = arith.mulf %75, %73 : vector<8x256xf32>
    %77 = arith.addf %72, %76 : vector<8x256xf32>
    %c0_16 = arith.constant 0 : index
    %c0_17 = arith.constant 0 : index
    %78 = vector.load %arg6[%c0_16, %c0_17] : memref<7x256xf32, #tpu.memory_space<vmem>>, vector<1x256xf32>
    %79 = vector.broadcast %78 : vector<1x256xf32> to vector<8x256xf32>
    %80 = arith.mulf %77, %79 : vector<8x256xf32>
    %81 = arith.addf %41, %80 : vector<8x256xf32>
    %cst_18 = arith.constant 0.000000e+00 : f32
    %82 = vector.broadcast %cst_18 : f32 to vector<8x256xf32>
    %83 = vector.extract_strided_slice %39 {offsets = [0, 78], sizes = [8, 256], strides = [1, 1]} : vector<8x512xf32> to vector<8x256xf32>
    %84 = vector.extract_strided_slice %40 {offsets = [0, 1], sizes = [8, 1], strides = [1, 1]} : vector<8x49xf32> to vector<8x1xf32>
    %85 = vector.broadcast %84 : vector<8x1xf32> to vector<8x256xf32>
    %86 = arith.mulf %85, %83 : vector<8x256xf32>
    %87 = arith.addf %82, %86 : vector<8x256xf32>
    %88 = vector.extract_strided_slice %39 {offsets = [0, 94], sizes = [8, 256], strides = [1, 1]} : vector<8x512xf32> to vector<8x256xf32>
    %89 = vector.extract_strided_slice %40 {offsets = [0, 8], sizes = [8, 1], strides = [1, 1]} : vector<8x49xf32> to vector<8x1xf32>
    %90 = vector.broadcast %89 : vector<8x1xf32> to vector<8x256xf32>
    %91 = arith.mulf %90, %88 : vector<8x256xf32>
    %92 = arith.addf %87, %91 : vector<8x256xf32>
    %93 = vector.extract_strided_slice %39 {offsets = [0, 110], sizes = [8, 256], strides = [1, 1]} : vector<8x512xf32> to vector<8x256xf32>
    %94 = vector.extract_strided_slice %40 {offsets = [0, 15], sizes = [8, 1], strides = [1, 1]} : vector<8x49xf32> to vector<8x1xf32>
    %95 = vector.broadcast %94 : vector<8x1xf32> to vector<8x256xf32>
    %96 = arith.mulf %95, %93 : vector<8x256xf32>
    %97 = arith.addf %92, %96 : vector<8x256xf32>
    %98 = vector.extract_strided_slice %39 {offsets = [0, 126], sizes = [8, 256], strides = [1, 1]} : vector<8x512xf32> to vector<8x256xf32>
    %99 = vector.extract_strided_slice %40 {offsets = [0, 22], sizes = [8, 1], strides = [1, 1]} : vector<8x49xf32> to vector<8x1xf32>
    %100 = vector.broadcast %99 : vector<8x1xf32> to vector<8x256xf32>
    %101 = arith.mulf %100, %98 : vector<8x256xf32>
    %102 = arith.addf %97, %101 : vector<8x256xf32>
    %103 = vector.extract_strided_slice %39 {offsets = [0, 142], sizes = [8, 256], strides = [1, 1]} : vector<8x512xf32> to vector<8x256xf32>
    %104 = vector.extract_strided_slice %40 {offsets = [0, 29], sizes = [8, 1], strides = [1, 1]} : vector<8x49xf32> to vector<8x1xf32>
    %105 = vector.broadcast %104 : vector<8x1xf32> to vector<8x256xf32>
    %106 = arith.mulf %105, %103 : vector<8x256xf32>
    %107 = arith.addf %102, %106 : vector<8x256xf32>
    %108 = vector.extract_strided_slice %39 {offsets = [0, 158], sizes = [8, 256], strides = [1, 1]} : vector<8x512xf32> to vector<8x256xf32>
    %109 = vector.extract_strided_slice %40 {offsets = [0, 36], sizes = [8, 1], strides = [1, 1]} : vector<8x49xf32> to vector<8x1xf32>
    %110 = vector.broadcast %109 : vector<8x1xf32> to vector<8x256xf32>
    %111 = arith.mulf %110, %108 : vector<8x256xf32>
    %112 = arith.addf %107, %111 : vector<8x256xf32>
    %113 = vector.extract_strided_slice %39 {offsets = [0, 174], sizes = [8, 256], strides = [1, 1]} : vector<8x512xf32> to vector<8x256xf32>
    %114 = vector.extract_strided_slice %40 {offsets = [0, 43], sizes = [8, 1], strides = [1, 1]} : vector<8x49xf32> to vector<8x1xf32>
    %115 = vector.broadcast %114 : vector<8x1xf32> to vector<8x256xf32>
    %116 = arith.mulf %115, %113 : vector<8x256xf32>
    %117 = arith.addf %112, %116 : vector<8x256xf32>
    %c1 = arith.constant 1 : index
    %c0_19 = arith.constant 0 : index
    %118 = vector.load %arg6[%c1, %c0_19] : memref<7x256xf32, #tpu.memory_space<vmem>>, vector<1x256xf32>
    %119 = vector.broadcast %118 : vector<1x256xf32> to vector<8x256xf32>
    %120 = arith.mulf %117, %119 : vector<8x256xf32>
    %121 = arith.addf %81, %120 : vector<8x256xf32>
    %cst_20 = arith.constant 0.000000e+00 : f32
    %122 = vector.broadcast %cst_20 : f32 to vector<8x256xf32>
    %123 = vector.extract_strided_slice %39 {offsets = [0, 79], sizes = [8, 256], strides = [1, 1]} : vector<8x512xf32> to vector<8x256xf32>
    %124 = vector.extract_strided_slice %40 {offsets = [0, 2], sizes = [8, 1], strides = [1, 1]} : vector<8x49xf32> to vector<8x1xf32>
    %125 = vector.broadcast %124 : vector<8x1xf32> to vector<8x256xf32>
    %126 = arith.mulf %125, %123 : vector<8x256xf32>
    %127 = arith.addf %122, %126 : vector<8x256xf32>
    %128 = vector.extract_strided_slice %39 {offsets = [0, 95], sizes = [8, 256], strides = [1, 1]} : vector<8x512xf32> to vector<8x256xf32>
    %129 = vector.extract_strided_slice %40 {offsets = [0, 9], sizes = [8, 1], strides = [1, 1]} : vector<8x49xf32> to vector<8x1xf32>
    %130 = vector.broadcast %129 : vector<8x1xf32> to vector<8x256xf32>
    %131 = arith.mulf %130, %128 : vector<8x256xf32>
    %132 = arith.addf %127, %131 : vector<8x256xf32>
    %133 = vector.extract_strided_slice %39 {offsets = [0, 111], sizes = [8, 256], strides = [1, 1]} : vector<8x512xf32> to vector<8x256xf32>
    %134 = vector.extract_strided_slice %40 {offsets = [0, 16], sizes = [8, 1], strides = [1, 1]} : vector<8x49xf32> to vector<8x1xf32>
    %135 = vector.broadcast %134 : vector<8x1xf32> to vector<8x256xf32>
    %136 = arith.mulf %135, %133 : vector<8x256xf32>
    %137 = arith.addf %132, %136 : vector<8x256xf32>
    %138 = vector.extract_strided_slice %39 {offsets = [0, 127], sizes = [8, 256], strides = [1, 1]} : vector<8x512xf32> to vector<8x256xf32>
    %139 = vector.extract_strided_slice %40 {offsets = [0, 23], sizes = [8, 1], strides = [1, 1]} : vector<8x49xf32> to vector<8x1xf32>
    %140 = vector.broadcast %139 : vector<8x1xf32> to vector<8x256xf32>
    %141 = arith.mulf %140, %138 : vector<8x256xf32>
    %142 = arith.addf %137, %141 : vector<8x256xf32>
    %143 = vector.extract_strided_slice %39 {offsets = [0, 143], sizes = [8, 256], strides = [1, 1]} : vector<8x512xf32> to vector<8x256xf32>
    %144 = vector.extract_strided_slice %40 {offsets = [0, 30], sizes = [8, 1], strides = [1, 1]} : vector<8x49xf32> to vector<8x1xf32>
    %145 = vector.broadcast %144 : vector<8x1xf32> to vector<8x256xf32>
    %146 = arith.mulf %145, %143 : vector<8x256xf32>
    %147 = arith.addf %142, %146 : vector<8x256xf32>
    %148 = vector.extract_strided_slice %39 {offsets = [0, 159], sizes = [8, 256], strides = [1, 1]} : vector<8x512xf32> to vector<8x256xf32>
    %149 = vector.extract_strided_slice %40 {offsets = [0, 37], sizes = [8, 1], strides = [1, 1]} : vector<8x49xf32> to vector<8x1xf32>
    %150 = vector.broadcast %149 : vector<8x1xf32> to vector<8x256xf32>
    %151 = arith.mulf %150, %148 : vector<8x256xf32>
    %152 = arith.addf %147, %151 : vector<8x256xf32>
    %153 = vector.extract_strided_slice %39 {offsets = [0, 175], sizes = [8, 256], strides = [1, 1]} : vector<8x512xf32> to vector<8x256xf32>
    %154 = vector.extract_strided_slice %40 {offsets = [0, 44], sizes = [8, 1], strides = [1, 1]} : vector<8x49xf32> to vector<8x1xf32>
    %155 = vector.broadcast %154 : vector<8x1xf32> to vector<8x256xf32>
    %156 = arith.mulf %155, %153 : vector<8x256xf32>
    %157 = arith.addf %152, %156 : vector<8x256xf32>
    %c2 = arith.constant 2 : index
    %c0_21 = arith.constant 0 : index
    %158 = vector.load %arg6[%c2, %c0_21] : memref<7x256xf32, #tpu.memory_space<vmem>>, vector<1x256xf32>
    %159 = vector.broadcast %158 : vector<1x256xf32> to vector<8x256xf32>
    %160 = arith.mulf %157, %159 : vector<8x256xf32>
    %161 = arith.addf %121, %160 : vector<8x256xf32>
    %cst_22 = arith.constant 0.000000e+00 : f32
    %162 = vector.broadcast %cst_22 : f32 to vector<8x256xf32>
    %163 = vector.extract_strided_slice %39 {offsets = [0, 80], sizes = [8, 256], strides = [1, 1]} : vector<8x512xf32> to vector<8x256xf32>
    %164 = vector.extract_strided_slice %40 {offsets = [0, 3], sizes = [8, 1], strides = [1, 1]} : vector<8x49xf32> to vector<8x1xf32>
    %165 = vector.broadcast %164 : vector<8x1xf32> to vector<8x256xf32>
    %166 = arith.mulf %165, %163 : vector<8x256xf32>
    %167 = arith.addf %162, %166 : vector<8x256xf32>
    %168 = vector.extract_strided_slice %39 {offsets = [0, 96], sizes = [8, 256], strides = [1, 1]} : vector<8x512xf32> to vector<8x256xf32>
    %169 = vector.extract_strided_slice %40 {offsets = [0, 10], sizes = [8, 1], strides = [1, 1]} : vector<8x49xf32> to vector<8x1xf32>
    %170 = vector.broadcast %169 : vector<8x1xf32> to vector<8x256xf32>
    %171 = arith.mulf %170, %168 : vector<8x256xf32>
    %172 = arith.addf %167, %171 : vector<8x256xf32>
    %173 = vector.extract_strided_slice %39 {offsets = [0, 112], sizes = [8, 256], strides = [1, 1]} : vector<8x512xf32> to vector<8x256xf32>
    %174 = vector.extract_strided_slice %40 {offsets = [0, 17], sizes = [8, 1], strides = [1, 1]} : vector<8x49xf32> to vector<8x1xf32>
    %175 = vector.broadcast %174 : vector<8x1xf32> to vector<8x256xf32>
    %176 = arith.mulf %175, %173 : vector<8x256xf32>
    %177 = arith.addf %172, %176 : vector<8x256xf32>
    %178 = vector.extract_strided_slice %39 {offsets = [0, 128], sizes = [8, 256], strides = [1, 1]} : vector<8x512xf32> to vector<8x256xf32>
    %179 = vector.extract_strided_slice %40 {offsets = [0, 24], sizes = [8, 1], strides = [1, 1]} : vector<8x49xf32> to vector<8x1xf32>
    %180 = vector.broadcast %179 : vector<8x1xf32> to vector<8x256xf32>
    %181 = arith.mulf %180, %178 : vector<8x256xf32>
    %182 = arith.addf %177, %181 : vector<8x256xf32>
    %183 = vector.extract_strided_slice %39 {offsets = [0, 144], sizes = [8, 256], strides = [1, 1]} : vector<8x512xf32> to vector<8x256xf32>
    %184 = vector.extract_strided_slice %40 {offsets = [0, 31], sizes = [8, 1], strides = [1, 1]} : vector<8x49xf32> to vector<8x1xf32>
    %185 = vector.broadcast %184 : vector<8x1xf32> to vector<8x256xf32>
    %186 = arith.mulf %185, %183 : vector<8x256xf32>
    %187 = arith.addf %182, %186 : vector<8x256xf32>
    %188 = vector.extract_strided_slice %39 {offsets = [0, 160], sizes = [8, 256], strides = [1, 1]} : vector<8x512xf32> to vector<8x256xf32>
    %189 = vector.extract_strided_slice %40 {offsets = [0, 38], sizes = [8, 1], strides = [1, 1]} : vector<8x49xf32> to vector<8x1xf32>
    %190 = vector.broadcast %189 : vector<8x1xf32> to vector<8x256xf32>
    %191 = arith.mulf %190, %188 : vector<8x256xf32>
    %192 = arith.addf %187, %191 : vector<8x256xf32>
    %193 = vector.extract_strided_slice %39 {offsets = [0, 176], sizes = [8, 256], strides = [1, 1]} : vector<8x512xf32> to vector<8x256xf32>
    %194 = vector.extract_strided_slice %40 {offsets = [0, 45], sizes = [8, 1], strides = [1, 1]} : vector<8x49xf32> to vector<8x1xf32>
    %195 = vector.broadcast %194 : vector<8x1xf32> to vector<8x256xf32>
    %196 = arith.mulf %195, %193 : vector<8x256xf32>
    %197 = arith.addf %192, %196 : vector<8x256xf32>
    %198 = arith.addf %161, %197 : vector<8x256xf32>
    %cst_23 = arith.constant 0.000000e+00 : f32
    %199 = vector.broadcast %cst_23 : f32 to vector<8x256xf32>
    %200 = vector.extract_strided_slice %39 {offsets = [0, 81], sizes = [8, 256], strides = [1, 1]} : vector<8x512xf32> to vector<8x256xf32>
    %201 = vector.extract_strided_slice %40 {offsets = [0, 4], sizes = [8, 1], strides = [1, 1]} : vector<8x49xf32> to vector<8x1xf32>
    %202 = vector.broadcast %201 : vector<8x1xf32> to vector<8x256xf32>
    %203 = arith.mulf %202, %200 : vector<8x256xf32>
    %204 = arith.addf %199, %203 : vector<8x256xf32>
    %205 = vector.extract_strided_slice %39 {offsets = [0, 97], sizes = [8, 256], strides = [1, 1]} : vector<8x512xf32> to vector<8x256xf32>
    %206 = vector.extract_strided_slice %40 {offsets = [0, 11], sizes = [8, 1], strides = [1, 1]} : vector<8x49xf32> to vector<8x1xf32>
    %207 = vector.broadcast %206 : vector<8x1xf32> to vector<8x256xf32>
    %208 = arith.mulf %207, %205 : vector<8x256xf32>
    %209 = arith.addf %204, %208 : vector<8x256xf32>
    %210 = vector.extract_strided_slice %39 {offsets = [0, 113], sizes = [8, 256], strides = [1, 1]} : vector<8x512xf32> to vector<8x256xf32>
    %211 = vector.extract_strided_slice %40 {offsets = [0, 18], sizes = [8, 1], strides = [1, 1]} : vector<8x49xf32> to vector<8x1xf32>
    %212 = vector.broadcast %211 : vector<8x1xf32> to vector<8x256xf32>
    %213 = arith.mulf %212, %210 : vector<8x256xf32>
    %214 = arith.addf %209, %213 : vector<8x256xf32>
    %215 = vector.extract_strided_slice %39 {offsets = [0, 129], sizes = [8, 256], strides = [1, 1]} : vector<8x512xf32> to vector<8x256xf32>
    %216 = vector.extract_strided_slice %40 {offsets = [0, 25], sizes = [8, 1], strides = [1, 1]} : vector<8x49xf32> to vector<8x1xf32>
    %217 = vector.broadcast %216 : vector<8x1xf32> to vector<8x256xf32>
    %218 = arith.mulf %217, %215 : vector<8x256xf32>
    %219 = arith.addf %214, %218 : vector<8x256xf32>
    %220 = vector.extract_strided_slice %39 {offsets = [0, 145], sizes = [8, 256], strides = [1, 1]} : vector<8x512xf32> to vector<8x256xf32>
    %221 = vector.extract_strided_slice %40 {offsets = [0, 32], sizes = [8, 1], strides = [1, 1]} : vector<8x49xf32> to vector<8x1xf32>
    %222 = vector.broadcast %221 : vector<8x1xf32> to vector<8x256xf32>
    %223 = arith.mulf %222, %220 : vector<8x256xf32>
    %224 = arith.addf %219, %223 : vector<8x256xf32>
    %225 = vector.extract_strided_slice %39 {offsets = [0, 161], sizes = [8, 256], strides = [1, 1]} : vector<8x512xf32> to vector<8x256xf32>
    %226 = vector.extract_strided_slice %40 {offsets = [0, 39], sizes = [8, 1], strides = [1, 1]} : vector<8x49xf32> to vector<8x1xf32>
    %227 = vector.broadcast %226 : vector<8x1xf32> to vector<8x256xf32>
    %228 = arith.mulf %227, %225 : vector<8x256xf32>
    %229 = arith.addf %224, %228 : vector<8x256xf32>
    %230 = vector.extract_strided_slice %39 {offsets = [0, 177], sizes = [8, 256], strides = [1, 1]} : vector<8x512xf32> to vector<8x256xf32>
    %231 = vector.extract_strided_slice %40 {offsets = [0, 46], sizes = [8, 1], strides = [1, 1]} : vector<8x49xf32> to vector<8x1xf32>
    %232 = vector.broadcast %231 : vector<8x1xf32> to vector<8x256xf32>
    %233 = arith.mulf %232, %230 : vector<8x256xf32>
    %234 = arith.addf %229, %233 : vector<8x256xf32>
    %c4 = arith.constant 4 : index
    %c0_24 = arith.constant 0 : index
    %235 = vector.load %arg6[%c4, %c0_24] : memref<7x256xf32, #tpu.memory_space<vmem>>, vector<1x256xf32>
    %236 = vector.broadcast %235 : vector<1x256xf32> to vector<8x256xf32>
    %237 = arith.mulf %234, %236 : vector<8x256xf32>
    %238 = arith.addf %198, %237 : vector<8x256xf32>
    %cst_25 = arith.constant 0.000000e+00 : f32
    %239 = vector.broadcast %cst_25 : f32 to vector<8x256xf32>
    %240 = vector.extract_strided_slice %39 {offsets = [0, 82], sizes = [8, 256], strides = [1, 1]} : vector<8x512xf32> to vector<8x256xf32>
    %241 = vector.extract_strided_slice %40 {offsets = [0, 5], sizes = [8, 1], strides = [1, 1]} : vector<8x49xf32> to vector<8x1xf32>
    %242 = vector.broadcast %241 : vector<8x1xf32> to vector<8x256xf32>
    %243 = arith.mulf %242, %240 : vector<8x256xf32>
    %244 = arith.addf %239, %243 : vector<8x256xf32>
    %245 = vector.extract_strided_slice %39 {offsets = [0, 98], sizes = [8, 256], strides = [1, 1]} : vector<8x512xf32> to vector<8x256xf32>
    %246 = vector.extract_strided_slice %40 {offsets = [0, 12], sizes = [8, 1], strides = [1, 1]} : vector<8x49xf32> to vector<8x1xf32>
    %247 = vector.broadcast %246 : vector<8x1xf32> to vector<8x256xf32>
    %248 = arith.mulf %247, %245 : vector<8x256xf32>
    %249 = arith.addf %244, %248 : vector<8x256xf32>
    %250 = vector.extract_strided_slice %39 {offsets = [0, 114], sizes = [8, 256], strides = [1, 1]} : vector<8x512xf32> to vector<8x256xf32>
    %251 = vector.extract_strided_slice %40 {offsets = [0, 19], sizes = [8, 1], strides = [1, 1]} : vector<8x49xf32> to vector<8x1xf32>
    %252 = vector.broadcast %251 : vector<8x1xf32> to vector<8x256xf32>
    %253 = arith.mulf %252, %250 : vector<8x256xf32>
    %254 = arith.addf %249, %253 : vector<8x256xf32>
    %255 = vector.extract_strided_slice %39 {offsets = [0, 130], sizes = [8, 256], strides = [1, 1]} : vector<8x512xf32> to vector<8x256xf32>
    %256 = vector.extract_strided_slice %40 {offsets = [0, 26], sizes = [8, 1], strides = [1, 1]} : vector<8x49xf32> to vector<8x1xf32>
    %257 = vector.broadcast %256 : vector<8x1xf32> to vector<8x256xf32>
    %258 = arith.mulf %257, %255 : vector<8x256xf32>
    %259 = arith.addf %254, %258 : vector<8x256xf32>
    %260 = vector.extract_strided_slice %39 {offsets = [0, 146], sizes = [8, 256], strides = [1, 1]} : vector<8x512xf32> to vector<8x256xf32>
    %261 = vector.extract_strided_slice %40 {offsets = [0, 33], sizes = [8, 1], strides = [1, 1]} : vector<8x49xf32> to vector<8x1xf32>
    %262 = vector.broadcast %261 : vector<8x1xf32> to vector<8x256xf32>
    %263 = arith.mulf %262, %260 : vector<8x256xf32>
    %264 = arith.addf %259, %263 : vector<8x256xf32>
    %265 = vector.extract_strided_slice %39 {offsets = [0, 162], sizes = [8, 256], strides = [1, 1]} : vector<8x512xf32> to vector<8x256xf32>
    %266 = vector.extract_strided_slice %40 {offsets = [0, 40], sizes = [8, 1], strides = [1, 1]} : vector<8x49xf32> to vector<8x1xf32>
    %267 = vector.broadcast %266 : vector<8x1xf32> to vector<8x256xf32>
    %268 = arith.mulf %267, %265 : vector<8x256xf32>
    %269 = arith.addf %264, %268 : vector<8x256xf32>
    %270 = vector.extract_strided_slice %39 {offsets = [0, 178], sizes = [8, 256], strides = [1, 1]} : vector<8x512xf32> to vector<8x256xf32>
    %271 = vector.extract_strided_slice %40 {offsets = [0, 47], sizes = [8, 1], strides = [1, 1]} : vector<8x49xf32> to vector<8x1xf32>
    %272 = vector.broadcast %271 : vector<8x1xf32> to vector<8x256xf32>
    %273 = arith.mulf %272, %270 : vector<8x256xf32>
    %274 = arith.addf %269, %273 : vector<8x256xf32>
    %c5 = arith.constant 5 : index
    %c0_26 = arith.constant 0 : index
    %275 = vector.load %arg6[%c5, %c0_26] : memref<7x256xf32, #tpu.memory_space<vmem>>, vector<1x256xf32>
    %276 = vector.broadcast %275 : vector<1x256xf32> to vector<8x256xf32>
    %277 = arith.mulf %274, %276 : vector<8x256xf32>
    %278 = arith.addf %238, %277 : vector<8x256xf32>
    %cst_27 = arith.constant 0.000000e+00 : f32
    %279 = vector.broadcast %cst_27 : f32 to vector<8x256xf32>
    %280 = vector.extract_strided_slice %39 {offsets = [0, 83], sizes = [8, 256], strides = [1, 1]} : vector<8x512xf32> to vector<8x256xf32>
    %281 = vector.extract_strided_slice %40 {offsets = [0, 6], sizes = [8, 1], strides = [1, 1]} : vector<8x49xf32> to vector<8x1xf32>
    %282 = vector.broadcast %281 : vector<8x1xf32> to vector<8x256xf32>
    %283 = arith.mulf %282, %280 : vector<8x256xf32>
    %284 = arith.addf %279, %283 : vector<8x256xf32>
    %285 = vector.extract_strided_slice %39 {offsets = [0, 99], sizes = [8, 256], strides = [1, 1]} : vector<8x512xf32> to vector<8x256xf32>
    %286 = vector.extract_strided_slice %40 {offsets = [0, 13], sizes = [8, 1], strides = [1, 1]} : vector<8x49xf32> to vector<8x1xf32>
    %287 = vector.broadcast %286 : vector<8x1xf32> to vector<8x256xf32>
    %288 = arith.mulf %287, %285 : vector<8x256xf32>
    %289 = arith.addf %284, %288 : vector<8x256xf32>
    %290 = vector.extract_strided_slice %39 {offsets = [0, 115], sizes = [8, 256], strides = [1, 1]} : vector<8x512xf32> to vector<8x256xf32>
    %291 = vector.extract_strided_slice %40 {offsets = [0, 20], sizes = [8, 1], strides = [1, 1]} : vector<8x49xf32> to vector<8x1xf32>
    %292 = vector.broadcast %291 : vector<8x1xf32> to vector<8x256xf32>
    %293 = arith.mulf %292, %290 : vector<8x256xf32>
    %294 = arith.addf %289, %293 : vector<8x256xf32>
    %295 = vector.extract_strided_slice %39 {offsets = [0, 131], sizes = [8, 256], strides = [1, 1]} : vector<8x512xf32> to vector<8x256xf32>
    %296 = vector.extract_strided_slice %40 {offsets = [0, 27], sizes = [8, 1], strides = [1, 1]} : vector<8x49xf32> to vector<8x1xf32>
    %297 = vector.broadcast %296 : vector<8x1xf32> to vector<8x256xf32>
    %298 = arith.mulf %297, %295 : vector<8x256xf32>
    %299 = arith.addf %294, %298 : vector<8x256xf32>
    %300 = vector.extract_strided_slice %39 {offsets = [0, 147], sizes = [8, 256], strides = [1, 1]} : vector<8x512xf32> to vector<8x256xf32>
    %301 = vector.extract_strided_slice %40 {offsets = [0, 34], sizes = [8, 1], strides = [1, 1]} : vector<8x49xf32> to vector<8x1xf32>
    %302 = vector.broadcast %301 : vector<8x1xf32> to vector<8x256xf32>
    %303 = arith.mulf %302, %300 : vector<8x256xf32>
    %304 = arith.addf %299, %303 : vector<8x256xf32>
    %305 = vector.extract_strided_slice %39 {offsets = [0, 163], sizes = [8, 256], strides = [1, 1]} : vector<8x512xf32> to vector<8x256xf32>
    %306 = vector.extract_strided_slice %40 {offsets = [0, 41], sizes = [8, 1], strides = [1, 1]} : vector<8x49xf32> to vector<8x1xf32>
    %307 = vector.broadcast %306 : vector<8x1xf32> to vector<8x256xf32>
    %308 = arith.mulf %307, %305 : vector<8x256xf32>
    %309 = arith.addf %304, %308 : vector<8x256xf32>
    %310 = vector.extract_strided_slice %39 {offsets = [0, 179], sizes = [8, 256], strides = [1, 1]} : vector<8x512xf32> to vector<8x256xf32>
    %311 = vector.extract_strided_slice %40 {offsets = [0, 48], sizes = [8, 1], strides = [1, 1]} : vector<8x49xf32> to vector<8x1xf32>
    %312 = vector.broadcast %311 : vector<8x1xf32> to vector<8x256xf32>
    %313 = arith.mulf %312, %310 : vector<8x256xf32>
    %314 = arith.addf %309, %313 : vector<8x256xf32>
    %c6 = arith.constant 6 : index
    %c0_28 = arith.constant 0 : index
    %315 = vector.load %arg6[%c6, %c0_28] : memref<7x256xf32, #tpu.memory_space<vmem>>, vector<1x256xf32>
    %316 = vector.broadcast %315 : vector<1x256xf32> to vector<8x256xf32>
    %317 = arith.mulf %314, %316 : vector<8x256xf32>
    %318 = arith.addf %278, %317 : vector<8x256xf32>
    %319 = vector.broadcast %7 : vector<8x1xf32> to vector<8x256xf32>
    %320 = arith.addf %318, %319 : vector<8x256xf32>
    %321 = arith.mulf %37, %320 : vector<8x256xf32>
    %c0_29 = arith.constant 0 : index
    %c0_30 = arith.constant 0 : index
    %322 = vector.load %arg5[%c0_29, %c0_30] : memref<8x8xf32, #tpu.memory_space<vmem>>, vector<8x8xf32>
    %cst_31 = arith.constant dense<0.000000e+00> : vector<8x256xf32>
    %323 = tpu.matmul %322, %321, %cst_31 {dimension_numbers = #tpu.dot_dimension_numbers<[1], [0], [0], [1], [0, 0, 1, 1], [], []>} : vector<8x8xf32>, vector<8x256xf32>, vector<8x256xf32> -> vector<8x256xf32>
    %324 = vector.broadcast %8 : vector<8x1xf32> to vector<8x256xf32>
    %325 = arith.addf %323, %324 : vector<8x256xf32>
    %326 = vector.broadcast %9 : vector<8x1xf32> to vector<8x256xf32>
    %327 = arith.mulf %325, %326 : vector<8x256xf32>
    %328 = arith.addf %327, %1 : vector<8x256xf32>
    %c0_32 = arith.constant 0 : index
    %c0_33 = arith.constant 0 : index
    %c0_34 = arith.constant 0 : index
    %329 = vector.load %arg7[%c0_32, %c0_33, %c0_34] : memref<1x8x256xf32, #tpu.memory_space<vmem>>, vector<1x8x256xf32>
    %330 = vector.shape_cast %329 : vector<1x8x256xf32> to vector<8x256xf32>
    %331 = vector.shape_cast %328 : vector<8x256xf32> to vector<1x8x256xf32>
    tpu.vector_store %arg7[%c0_32, %c0_33, %c0_34], %331 {strides = array<i32>} : memref<1x8x256xf32, #tpu.memory_space<vmem>>, vector<1x8x256xf32>,
    return
  }
  func.func @transform_0(%arg0: i32) -> (i32, i32, i32) {
    %c0_i32 = arith.constant 0 : i32
    %c0_i32_0 = arith.constant 0 : i32
    %c0_i32_1 = arith.constant 0 : i32
    return %arg0, %c0_i32, %c0_i32_0 : i32, i32, i32
  }
  func.func @transform_1(%arg0: i32) -> (i32, i32) {
    %c0_i32 = arith.constant 0 : i32
    %c0_i32_0 = arith.constant 0 : i32
    %c0_i32_1 = arith.constant 0 : i32
    return %c0_i32, %c0_i32_0 : i32, i32
  }
  func.func @transform_2(%arg0: i32) -> (i32, i32) {
    %c0_i32 = arith.constant 0 : i32
    %c0_i32_0 = arith.constant 0 : i32
    %c0_i32_1 = arith.constant 0 : i32
    return %c0_i32, %c0_i32_0 : i32, i32
  }
  func.func @transform_3(%arg0: i32) -> (i32, i32) {
    %c0_i32 = arith.constant 0 : i32
    %c0_i32_0 = arith.constant 0 : i32
    %c0_i32_1 = arith.constant 0 : i32
    return %c0_i32, %c0_i32_0 : i32, i32
  }
  func.func @transform_4(%arg0: i32) -> (i32, i32) {
    %c0_i32 = arith.constant 0 : i32
    %c0_i32_0 = arith.constant 0 : i32
    %c0_i32_1 = arith.constant 0 : i32
    return %c0_i32, %c0_i32_0 : i32, i32
  }
  func.func @transform_5(%arg0: i32) -> (i32, i32) {
    %c0_i32 = arith.constant 0 : i32
    %c0_i32_0 = arith.constant 0 : i32
    %c0_i32_1 = arith.constant 0 : i32
    return %c0_i32, %c0_i32_0 : i32, i32
  }
  func.func @transform_6(%arg0: i32) -> (i32, i32, i32) {
    %c0_i32 = arith.constant 0 : i32
    %c0_i32_0 = arith.constant 0 : i32
    %c0_i32_1 = arith.constant 0 : i32
    return %arg0, %c0_i32, %c0_i32_0 : i32, i32, i32
  }
}

</mosaic_0001>

<llo_original>
// kernel: tpu_custom_call.1
$region0: #{tpu_custom_call.1}
  #allocation0 [shape = 'u32[]', space=smem, size = 0x4, offset = 0x4, fixed_abs, tag = 'smem constant byte address 0x4 - core index']
  #allocation1 [shape = 'u32[72,128]{1,0:T(1,128)}', space=vmem, size = 0x9000, scoped, tag = 'internal scratch']
  %s0 = inlined_call_operand.hbm [shape: f32[2,8,256], index: 0, kind: input, shape index: {}]
  %s1 = inlined_call_operand.vmem [shape: f32[8,7], index: 1, kind: input, shape index: {}]
  %s2 = inlined_call_operand.vmem [shape: f32[16,8], index: 2, kind: input, shape index: {}]
  %s3 = inlined_call_operand.hbm [shape: f32[8,49], index: 3, kind: input, shape index: {}]
  %s4 = inlined_call_operand.hbm [shape: f32[8,8], index: 4, kind: input, shape index: {}]
  %s5 = inlined_call_operand.vmem [shape: f32[7,256], index: 5, kind: input, shape index: {}]
  %s6 = inlined_call_operand.hbm [shape: f32[2,8,256], index: 6, kind: output, shape index: {}]
  %s7 = sld [smem:[#allocation0]]
  $region69: #{tpu_custom_call.1} parent=0
    _
  %s9 = ssub.s32 1, %s7
  %s10 = scalar_select 0, %s9, %s7
  $region1: #{tpu_custom_call.1} parent=0
    #allocation2 [shape = 'u8[16384]{0}', space=vmem, size = 0x4000, scoped, tag = 'input window, operand 0']
    #allocation3 [shape = 's32[2]{0}', space=sflag, size = 0x8, scoped, tag = 'scoped memory for tpu_custom_call.1']
    #allocation4 [shape = 's32[2]{0}', space=sflag, size = 0x8, scoped, tag = 'scoped memory for tpu_custom_call.1']
    #allocation5 [shape = 'u8[4096]{0}', space=vmem, size = 0x1000, scoped, tag = 'input window, operand 3, single buffered']
    #allocation6 [shape = 's32[1]{0}', space=sflag, size = 0x4, scoped, tag = 'scoped memory for tpu_custom_call.1']
    #allocation7 [shape = 'u8[4096]{0}', space=vmem, size = 0x1000, scoped, tag = 'input window, operand 4, single buffered']
    #allocation8 [shape = 'u8[16384]{0}', space=vmem, size = 0x4000, scoped, tag = 'output window, operand 0']
    %11 = vsyncpa [#allocation3], 0
    %s12 = scalar_lea.sflag [#allocation3], 1
    %13 = vsyncpa %s12, 0
    %14 = vsyncpa [#allocation6], 0
    %15 = vsyncpa [#allocation4], 0
    %s16 = scalar_lea.sflag [#allocation4], 1
    %17 = vsyncpa %s16, 0
    loop: start=0, step=1, limit=4
    $region2: #{tpu_custom_call.1} parent=1 // loop_pre_header
      _
    $region3: #{tpu_custom_call.1} parent=1 // loop_header
      %s19 = sphi 0, %s23
      %p20 = scmp.ge.s32.totalorder %s19, 4
      %s29 = sphi 0, %s31
      %s32 = sphi 0, %s29
      %s33 = sphi 0, %s32
      %s49 = sphi 0, %s33
      %s53 = sphi 0, %s53
      %s55 = sphi 0, %s53
      %s56 = sphi 0, %s55
      %s70 = sphi 0, %s56
      %s74 = sphi 0, %s74
      %s76 = sphi 0, %s74
      %s77 = sphi 0, %s76
      %s91 = sphi 0, %s77
      %s95 = sphi 0, %s95
      %s97 = sphi 0, %s95
      %s98 = sphi 0, %s97
      %s112 = sphi 0, %s98
      %s116 = sphi 0, %s116
      %s118 = sphi 0, %s116
      %s119 = sphi 0, %s118
      %s133 = sphi 0, %s119
      %s137 = sphi 0, %s137
      %s139 = sphi 0, %s137
      %s140 = sphi 0, %s139
      %s154 = sphi 0, %s140
      %s160 = sphi 0, %s162
      %s163 = sphi 0, %s160
      %s164 = sphi 0, %s163
      %s180 = sphi 0, %s164
    $region4: #{tpu_custom_call.1} parent=1 // loop_header_branch
      %22 = sbr.rel (%p20) target = $region8
    $region5: #{tpu_custom_call.1} parent=1 // loop_body
      %s24 = ssub.s32 %s19, 1
      %s25 = ssub.s32 %s19, 2
      %s26 = sadd.s32 %s19, 1
      %s27 = ssub.s32 %s19, %s26
      %p28 = scmp.eq.s32.totalorder %s27, 0
      %s30 = sadd.s32 %s29, 1
      %s31 = scalar_select %p28, %s29, %s30
      %p34 = pneg %p28
      %p35 = scmp.eq.s32.totalorder %s19, 1
      %p36 = por %p34, %p35
      %p37 = scmp.ne.s32.totalorder %s29, %s32
      %p38 = scmp.eq.s32.totalorder %s19, 0
      %p39 = por %p37, %p38
      %p40 = scmp.ne.s32.totalorder %s29, %s32
      %p41 = scmp.eq.s32.totalorder %s24, 1
      %p42 = por %p40, %p41
      %p43 = scmp.ne.s32.totalorder %s32, %s33
      %p44 = scmp.eq.s32.totalorder %s24, 0
      %p45 = por %p43, %p44
      %p46 = scmp.ne.s32.totalorder %s32, %s33
      %p47 = scmp.eq.s32.totalorder %s25, 1
      %p48 = por %p46, %p47
      %p50 = scmp.ne.s32.totalorder %s33, %s49
      %p51 = scmp.eq.s32.totalorder %s25, 0
      %p52 = por %p50, %p51
      %s54 = sadd.s32 %s53, 1
      %p57 = scmp.eq.s32.totalorder %s19, 1
      %p58 = scmp.ne.s32.totalorder %s53, %s55
      %p59 = scmp.eq.s32.totalorder %s19, 0
      %p60 = por %p58, %p59
      %p61 = scmp.ne.s32.totalorder %s53, %s55
      %p62 = scmp.eq.s32.totalorder %s24, 1
      %p63 = por %p61, %p62
      %p64 = scmp.ne.s32.totalorder %s55, %s56
      %p65 = scmp.eq.s32.totalorder %s24, 0
      %p66 = por %p64, %p65
      %p67 = scmp.ne.s32.totalorder %s55, %s56
      %p68 = scmp.eq.s32.totalorder %s25, 1
      %p69 = por %p67, %p68
      %p71 = scmp.ne.s32.totalorder %s56, %s70
      %p72 = scmp.eq.s32.totalorder %s25, 0
      %p73 = por %p71, %p72
      %s75 = sadd.s32 %s74, 1
      %p78 = scmp.eq.s32.totalorder %s19, 1
      %p79 = scmp.ne.s32.totalorder %s74, %s76
      %p80 = scmp.eq.s32.totalorder %s19, 0
      %p81 = por %p79, %p80
      %p82 = scmp.ne.s32.totalorder %s74, %s76
      %p83 = scmp.eq.s32.totalorder %s24, 1
      %p84 = por %p82, %p83
      %p85 = scmp.ne.s32.totalorder %s76, %s77
      %p86 = scmp.eq.s32.totalorder %s24, 0
      %p87 = por %p85, %p86
      %p88 = scmp.ne.s32.totalorder %s76, %s77
      %p89 = scmp.eq.s32.totalorder %s25, 1
      %p90 = por %p88, %p89
      %p92 = scmp.ne.s32.totalorder %s77, %s91
      %p93 = scmp.eq.s32.totalorder %s25, 0
      %p94 = por %p92, %p93
      %s96 = sadd.s32 %s95, 1
      %p99 = scmp.eq.s32.totalorder %s19, 1
      %p100 = scmp.ne.s32.totalorder %s95, %s97
      %p101 = scmp.eq.s32.totalorder %s19, 0
      %p102 = por %p100, %p101
      %p103 = scmp.ne.s32.totalorder %s95, %s97
      %p104 = scmp.eq.s32.totalorder %s24, 1
      %p105 = por %p103, %p104
      %p106 = scmp.ne.s32.totalorder %s97, %s98
      %p107 = scmp.eq.s32.totalorder %s24, 0
      %p108 = por %p106, %p107
      %p109 = scmp.ne.s32.totalorder %s97, %s98
      %p110 = scmp.eq.s32.totalorder %s25, 1
      %p111 = por %p109, %p110
      %p113 = scmp.ne.s32.totalorder %s98, %s112
      %p114 = scmp.eq.s32.totalorder %s25, 0
      %p115 = por %p113, %p114
      %s117 = sadd.s32 %s116, 1
      %p120 = scmp.eq.s32.totalorder %s19, 1
      %p121 = scmp.ne.s32.totalorder %s116, %s118
      %p122 = scmp.eq.s32.totalorder %s19, 0
      %p123 = por %p121, %p122
      %p124 = scmp.ne.s32.totalorder %s116, %s118
      %p125 = scmp.eq.s32.totalorder %s24, 1
      %p126 = por %p124, %p125
      %p127 = scmp.ne.s32.totalorder %s118, %s119
      %p128 = scmp.eq.s32.totalorder %s24, 0
      %p129 = por %p127, %p128
      %p130 = scmp.ne.s32.totalorder %s118, %s119
      %p131 = scmp.eq.s32.totalorder %s25, 1
      %p132 = por %p130, %p131
      %p134 = scmp.ne.s32.totalorder %s119, %s133
      %p135 = scmp.eq.s32.totalorder %s25, 0
      %p136 = por %p134, %p135
      %s138 = sadd.s32 %s137, 1
      %p141 = scmp.eq.s32.totalorder %s19, 1
      %p142 = scmp.ne.s32.totalorder %s137, %s139
      %p143 = scmp.eq.s32.totalorder %s19, 0
      %p144 = por %p142, %p143
      %p145 = scmp.ne.s32.totalorder %s137, %s139
      %p146 = scmp.eq.s32.totalorder %s24, 1
      %p147 = por %p145, %p146
      %p148 = scmp.ne.s32.totalorder %s139, %s140
      %p149 = scmp.eq.s32.totalorder %s24, 0
      %p150 = por %p148, %p149
      %p151 = scmp.ne.s32.totalorder %s139, %s140
      %p152 = scmp.eq.s32.totalorder %s25, 1
      %p153 = por %p151, %p152
      %p155 = scmp.ne.s32.totalorder %s140, %s154
      %p156 = scmp.eq.s32.totalorder %s25, 0
      %p157 = por %p155, %p156
      %s158 = ssub.s32 %s19, %s26
      %p159 = scmp.eq.s32.totalorder %s158, 0
      %s161 = sadd.s32 %s160, 1
      %s162 = scalar_select %p159, %s160, %s161
      %p165 = pneg %p159
      %p166 = scmp.eq.s32.totalorder %s19, 1
      %p167 = por %p165, %p166
      %p168 = scmp.ne.s32.totalorder %s160, %s163
      %p169 = scmp.eq.s32.totalorder %s19, 0
      %p170 = por %p168, %p169
      %p171 = scmp.ne.s32.totalorder %s160, %s163
      %p172 = scmp.eq.s32.totalorder %s24, 1
      %p173 = por %p171, %p172
      %p174 = scmp.ne.s32.totalorder %s163, %s164
      %p175 = scmp.eq.s32.totalorder %s24, 0
      %p176 = por %p174, %p175
      %p177 = scmp.ne.s32.totalorder %s163, %s164
      %p178 = scmp.eq.s32.totalorder %s25, 1
      %p179 = por %p177, %p178
      %p181 = scmp.ne.s32.totalorder %s164, %s180
      %p182 = scmp.eq.s32.totalorder %s25, 0
      %p183 = por %p181, %p182
      %p184 = scmp.le.s32.totalorder 1, %s19
      %p185 = scmp.lt.s32.totalorder %s19, 3
      %p186 = pnand %p184, %p185
      %p187 = pneg %p186
      // Predicated region
      $region9: #{tpu_custom_call.1} parent=5 // pred_check
        _
      $region10: #{tpu_custom_call.1} parent=5 // pred_check_branch
        %189 = sbr.rel (%p186) target = $region12
      $region11: #{tpu_custom_call.1} parent=5 // pred_region
        %s190 = ssub.s32 %s19, 1
        // Predicated region
        $region13: #{tpu_custom_call.1} parent=11 // pred_check
          %p191 = pneg %p66
        $region14: #{tpu_custom_call.1} parent=11 // pred_check_branch
          %193 = sbr.rel (%p191) target = $region16
        $region15: #{tpu_custom_call.1} parent=11 // pred_region
          _
        $region16: #{tpu_custom_call.1} parent=11 // pred_fallthru
          _
        // Predicated region
        $region17: #{tpu_custom_call.1} parent=11 // pred_check
          %p194 = pneg %p87
        $region18: #{tpu_custom_call.1} parent=11 // pred_check_branch
          %196 = sbr.rel (%p194) target = $region20
        $region19: #{tpu_custom_call.1} parent=11 // pred_region
          _
        $region20: #{tpu_custom_call.1} parent=11 // pred_fallthru
          _
        // Predicated region
        $region21: #{tpu_custom_call.1} parent=11 // pred_check
          %p197 = pneg %p108
        $region22: #{tpu_custom_call.1} parent=11 // pred_check_branch
          %199 = sbr.rel (%p197) target = $region24
        $region23: #{tpu_custom_call.1} parent=11 // pred_region
          %201 = vsyncadd [#allocation6], 0
          %s203 = sshll.u32 %s3, 4
          %s204 = int_to_ptr.hbm [resolvable:$true] %s203
          %s205 = sshll.u32 [#allocation5], 4
          %s206 = int_to_ptr.vmem [resolvable:$true] %s205
          %208 = dma.hbm_to_vmem [thread:$0]  %s204, 128, %s206, [#allocation6]
        $region24: #{tpu_custom_call.1} parent=11 // pred_fallthru
          _
        // Predicated region
        $region25: #{tpu_custom_call.1} parent=11 // pred_check
          %p209 = pneg %p129
        $region26: #{tpu_custom_call.1} parent=11 // pred_check_branch
          %211 = sbr.rel (%p209) target = $region28
        $region27: #{tpu_custom_call.1} parent=11 // pred_region
          %213 = vsyncadd [#allocation6], 0
          %s215 = sshll.u32 %s4, 4
          %s216 = int_to_ptr.hbm [resolvable:$true] %s215
          %s217 = sshll.u32 [#allocation7], 4
          %s218 = int_to_ptr.vmem [resolvable:$true] %s217
          %220 = dma.hbm_to_vmem [thread:$0]  %s216, 128, %s218, [#allocation6]
        $region28: #{tpu_custom_call.1} parent=11 // pred_fallthru
          _
        // Predicated region
        $region29: #{tpu_custom_call.1} parent=11 // pred_check
          %p221 = pneg %p150
        $region30: #{tpu_custom_call.1} parent=11 // pred_check_branch
          %223 = sbr.rel (%p221) target = $region32
        $region31: #{tpu_custom_call.1} parent=11 // pred_region
          _
        $region32: #{tpu_custom_call.1} parent=11 // pred_fallthru
          _
      $region12: #{tpu_custom_call.1} parent=5 // pred_fallthru
        _
      %p224 = scmp.lt.s32.totalorder %s19, 2
      // Predicated region
      $region33: #{tpu_custom_call.1} parent=5 // pred_check
        %p225 = pneg %p224
      $region34: #{tpu_custom_call.1} parent=5 // pred_check_branch
        %227 = sbr.rel (%p225) target = $region36
      $region35: #{tpu_custom_call.1} parent=5 // pred_region
        // Predicated region
        $region37: #{tpu_custom_call.1} parent=35 // pred_check
          %p228 = pneg %p39
        $region38: #{tpu_custom_call.1} parent=35 // pred_check_branch
          %230 = sbr.rel (%p228) target = $region40
        $region39: #{tpu_custom_call.1} parent=35 // pred_region
          %s231 = sand.u32 %s29, 1
          %s232 = scalar_lea.sflag [#allocation3], %s231
          %s233 = sand.u32 %s29, 1
          %s234 = smul.addr %s233, 16
          %s235 = scalar_lea.vmem [#allocation2], %s234
          %237 = vsyncadd %s232, 0
          %s238 = smul.addr %s19, 2
          %s239 = smul.addr %s238, 8
          %s240 = scalar_lea.hbm %s0, %s239
          %s242 = sshll.u32 %s240, 4
          %s243 = int_to_ptr.hbm [resolvable:$true] %s242
          %s244 = sshll.u32 %s235, 4
          %s245 = int_to_ptr.vmem [resolvable:$true] %s244
          %247 = dma.hbm_to_vmem [thread:$0]  %s243, 256, %s245, %s232
        $region40: #{tpu_custom_call.1} parent=35 // pred_fallthru
          _
      $region36: #{tpu_custom_call.1} parent=5 // pred_fallthru
        _
      %p248 = scmp.le.s32.totalorder 1, %s19
      %p249 = scmp.lt.s32.totalorder %s19, 3
      %p250 = pnand %p248, %p249
      %p251 = pneg %p250
      // Predicated region
      $region41: #{tpu_custom_call.1} parent=5 // pred_check
        _
      $region42: #{tpu_custom_call.1} parent=5 // pred_check_branch
        %253 = sbr.rel (%p250) target = $region44
      $region43: #{tpu_custom_call.1} parent=5 // pred_region
        %s254 = ssub.s32 %s19, 1
        %s255 = sand.u32 %s32, 1
        %s256 = scalar_lea.sflag [#allocation3], %s255
        %s257 = sand.u32 %s32, 1
        %s258 = smul.addr %s257, 16
        %s259 = scalar_lea.vmem [#allocation2], %s258
        // Predicated region
        $region45: #{tpu_custom_call.1} parent=43 // pred_check
          %p260 = pneg %p45
        $region46: #{tpu_custom_call.1} parent=43 // pred_check_branch
          %262 = sbr.rel (%p260) target = $region48
        $region47: #{tpu_custom_call.1} parent=43 // pred_region
          %264 = dma.done %s256, 256
        $region48: #{tpu_custom_call.1} parent=43 // pred_fallthru
          _
        // Predicated region
        $region49: #{tpu_custom_call.1} parent=43 // pred_check
          %p265 = pneg %p108
        $region50: #{tpu_custom_call.1} parent=43 // pred_check_branch
          %267 = sbr.rel (%p265) target = $region52
        $region51: #{tpu_custom_call.1} parent=43 // pred_region
          %269 = dma.done [#allocation6], 128
        $region52: #{tpu_custom_call.1} parent=43 // pred_fallthru
          _
        // Predicated region
        $region53: #{tpu_custom_call.1} parent=43 // pred_check
          %p270 = pneg %p129
        $region54: #{tpu_custom_call.1} parent=43 // pred_check_branch
          %272 = sbr.rel (%p270) target = $region56
        $region55: #{tpu_custom_call.1} parent=43 // pred_region
          %274 = dma.done [#allocation6], 128
        $region56: #{tpu_custom_call.1} parent=43 // pred_fallthru
          _
        %s275 = sand.u32 %s32, 1
        %s276 = scalar_lea.sflag [#allocation3], %s275
        %s277 = sand.u32 %s32, 1
        %s278 = smul.addr %s277, 16
        %s279 = scalar_lea.vmem [#allocation2], %s278
        %p280 = pneg %p45
        %p281 = pneg %p42
        %p282 = pneg %p66
        %p283 = pneg %p63
        %p284 = pneg %p87
        %p285 = pneg %p84
        %p286 = pneg %p108
        %p287 = pneg %p105
        %p288 = pneg %p129
        %p289 = pneg %p126
        %p290 = pneg %p150
        %p291 = pneg %p147
        %p292 = pneg %p176
        %p293 = pneg %p173
        %s294 = sand.u32 %s163, 1
        %s295 = scalar_lea.sflag [#allocation4], %s294
        %s296 = sand.u32 %s163, 1
        %s297 = smul.addr %s296, 16
        %s298 = scalar_lea.vmem [#allocation8], %s297
        %v299 = vld [vmem:[%s259] sm:$0xff]
        %v300 = vld [vmem:[%s259 + $0x8] sm:$0xff]
        %v301 = vld [vmem:[%s1] sm:$0xff]
        %v302 = vrot.slane %v299, 4
        %v303 = vadd.f32 %v299, %v302
        %v304 = vrot.slane %v303, 2
        %v305 = vadd.f32 %v303, %v304
        %v306 = vrot.slane %v305, 1
        %v307 = vadd.f32 %v305, %v306
        %v308 = vrot.slane %v300, 4
        %v309 = vadd.f32 %v300, %v308
        %v310 = vrot.slane %v309, 2
        %v311 = vadd.f32 %v309, %v310
        %v312 = vrot.slane %v311, 1
        %v313 = vadd.f32 %v311, %v312
        %v314 = vrcp.pop 8.0
        %v315 = vmul.f32 8.0, %v314
        %v316 = vsub.f32 1.0, %v315
        %v317 = vmul.f32 %v314, %v316
        %v318 = vadd.f32 %v314, %v317
        %vm319 = vweird.f32 %v314
        %v320 = vsel %vm319, %v314, %v318
        %v321 = vmul.f32 %v307, %v320
        %v322 = vmul.f32 %v313, %v320
        %v323 = vsub.f32 %v299, %v321
        %v324 = vsub.f32 %v300, %v322
        %v325 = vmul.f32 %v323, %v323
        %v326 = vmul.f32 %v324, %v324
        %v327 = vrot.slane %v325, 4
        %v328 = vadd.f32 %v325, %v327
        %v329 = vrot.slane %v328, 2
        %v330 = vadd.f32 %v328, %v329
        %v331 = vrot.slane %v330, 1
        %v332 = vadd.f32 %v330, %v331
        %v333 = vrot.slane %v326, 4
        %v334 = vadd.f32 %v326, %v333
        %v335 = vrot.slane %v334, 2
        %v336 = vadd.f32 %v334, %v335
        %v337 = vrot.slane %v336, 1
        %v338 = vadd.f32 %v336, %v337
        %v339 = vmul.f32 %v332, %v320
        %v340 = vmul.f32 %v338, %v320
        %v341 = vadd.f32 %v339, 1e-06
        %v342 = vadd.f32 %v340, 1e-06
        %v343 = vrsqrt.pop %v341
        %v344 = vmul.f32 %v343, %v341
        %v345 = vmul.f32 %v344, %v343
        %v346 = vmul.f32 0.5, %v345
        %v347 = vsub.f32 1.5, %v346
        %v348 = vmul.f32 %v343, %v347
        %vm349 = vweird.f32 %v341
        %vm350 = vweird.f32 %v343
        %vm351 = vmor %vm349, %vm350
        %v352 = vsel %vm351, %v343, %v348
        %v353 = vrsqrt.pop %v342
        %v354 = vmul.f32 %v353, %v342
        %v355 = vmul.f32 %v354, %v353
        %v356 = vmul.f32 0.5, %v355
        %v357 = vsub.f32 1.5, %v356
        %v358 = vmul.f32 %v353, %v357
        %vm359 = vweird.f32 %v342
        %vm360 = vweird.f32 %v353
        %vm361 = vmor %vm359, %vm360
        %v362 = vsel %vm361, %v353, %v358
        %v363 = vmul.f32 %v323, %v352
        %v364 = vmul.f32 %v324, %v362
        %366 = vset.pattern.permute.xlu0 0
        %367 = vperm.xlu0 %366, %v301
        %v368 = vpop.permute.xlu0 %367
        %v370 = vmul.f32 %v363, %v368
        %v371 = vmul.f32 %v364, %v368
        %372 = vset.pattern.permute.xlu0 1
        %373 = vperm.xlu0 %372, %v301
        %v374 = vpop.permute.xlu0 %373
        %v376 = vadd.f32 %v370, %v374
        %v377 = vadd.f32 %v371, %v374
        %v378 = vld [vmem:[%s2] sm:$0xff]
        %v379 = vld [vmem:[%s2 + $0x8] sm:$0xff]
        %vm380 = vcmask 64512
        %v382 = vsel %vm380, %v378, 0
        %v385 = vsel %vm380, %v379, 0
        %387 = vmatpush.msra.mxu0 0.0
        %388 = vmatpush.msra.mxu0 0.0
        %389 = vmatpush.msra.mxu0 0.0
        %390 = vmatpush.msra.mxu0 0.0
        %391 = vmatpush.msra.mxu0 0.0
        %392 = vmatpush.msra.mxu0 0.0
        %393 = vmatpush.msra.mxu0 0.0
        %394 = vmatpush.msra.mxu0 0.0
        %395 = vmatpush.msra.mxu0 0.0
        %396 = vmatpush.msra.mxu0 0.0
        %397 = vmatpush.msra.mxu0 0.0
        %398 = vmatpush.msra.mxu0 0.0
        %399 = vmatpush.msra.mxu0 0.0
        %400 = vmatpush.msra.mxu0 0.0
        %401 = vmatpush.msra.mxu0 0.0
        %402 = vmatpush.msra.mxu0 %v376
        %403 = vmatmul.f32.gmra.mxu0 %v382
        %v404 = vpop.f32.mrf.mxu0
        %v405 = vadd.f32 0.0, %v404
        %406 = vmatmul.f32.gmra.mxu0 %v385
        %v407 = vpop.f32.mrf.mxu0
        %v408 = vadd.f32 0.0, %v407
        %409 = vdwg.mxu0
        %410 = vmatpush.msra.mxu0 0.0
        %411 = vmatpush.msra.mxu0 0.0
        %412 = vmatpush.msra.mxu0 0.0
        %413 = vmatpush.msra.mxu0 0.0
        %414 = vmatpush.msra.mxu0 0.0
        %415 = vmatpush.msra.mxu0 0.0
        %416 = vmatpush.msra.mxu0 0.0
        %417 = vmatpush.msra.mxu0 0.0
        %418 = vmatpush.msra.mxu0 0.0
        %419 = vmatpush.msra.mxu0 0.0
        %420 = vmatpush.msra.mxu0 0.0
        %421 = vmatpush.msra.mxu0 0.0
        %422 = vmatpush.msra.mxu0 0.0
        %423 = vmatpush.msra.mxu0 0.0
        %424 = vmatpush.msra.mxu0 0.0
        %425 = vmatpush.msra.mxu0 %v377
        %426 = vmatmul.f32.gmra.mxu0 %v382
        %v427 = vpop.f32.mrf.mxu0
        %v428 = vadd.f32 0.0, %v427
        %429 = vmatmul.f32.gmra.mxu0 %v385
        %v430 = vpop.f32.mrf.mxu0
        %v431 = vadd.f32 0.0, %v430
        %432 = vdwg.mxu0
        %433 = vset.pattern.permute.xlu0 2
        %434 = vperm.xlu0 %433, %v301
        %v435 = vpop.permute.xlu0 %434
        %v437 = vadd.f32 %v405, %v435
        %v438 = vadd.f32 %v428, %v435
        %439 = vset.pattern.permute.xlu0 3
        %440 = vperm.xlu0 %439, %v301
        %v441 = vpop.permute.xlu0 %440
        %v443 = vadd.f32 %v408, %v441
        %v444 = vadd.f32 %v431, %v441
        %v445 = vld [vmem:[#allocation5] sm:$0xff]
        %447 = vset.pattern.permute.xlu0 0
        %448 = vperm.xlu0 %447, %v445
        %v449 = vpop.permute.xlu0 %448
        %v451 = vmul.f32 %v449, 0.0
        %v452 = vmul.f32 %v449, %v437
        %v453 = vmul.f32 %v449, %v438
        %v454 = vadd.f32 %v451, 0.0
        %v455 = vadd.f32 %v452, 0.0
        %v456 = vadd.f32 %v453, 0.0
        %457 = vset.pattern.permute.xlu0 7
        %458 = vperm.xlu0 %457, %v445
        %v459 = vpop.permute.xlu0 %458
        %v461 = vmul.f32 %v459, 0.0
        %v462 = vmul.f32 %v459, %v437
        %v463 = vmul.f32 %v459, %v438
        %467 = vrot.lane.b32.xlu0 %v461, 112
        %v468 = vpop.permute.xlu0 %467
        %469 = vrot.lane.b32.xlu0 %v462, 112
        %v470 = vpop.permute.xlu0 %469
        %471 = vrot.lane.b32.xlu0 %v463, 112
        %v472 = vpop.permute.xlu0 %471
        %vm473 = vcmask 916480
        %v474 = vsel %vm473, %v468, %v470
        %v475 = vsel %vm473, %v470, %v472
        %v479 = vadd.f32 %v454, %v474
        %v480 = vadd.f32 %v455, %v475
        %v481 = vadd.f32 %v456, %v472
        %482 = vset.pattern.permute.xlu0 14
        %483 = vperm.xlu0 %482, %v445
        %v484 = vpop.permute.xlu0 %483
        %v486 = vmul.f32 %v484, 0.0
        %v487 = vmul.f32 %v484, %v437
        %v488 = vmul.f32 %v484, %v438
        %492 = vrot.lane.b32.xlu0 %v486, 96
        %v493 = vpop.permute.xlu0 %492
        %494 = vrot.lane.b32.xlu0 %v487, 96
        %v495 = vpop.permute.xlu0 %494
        %496 = vrot.lane.b32.xlu0 %v488, 96
        %v497 = vpop.permute.xlu0 %496
        %vm498 = vcmask 785408
        %v499 = vsel %vm498, %v493, %v495
        %v500 = vsel %vm498, %v495, %v497
        %v504 = vadd.f32 %v479, %v499
        %v505 = vadd.f32 %v480, %v500
        %v506 = vadd.f32 %v481, %v497
        %507 = vset.pattern.permute.xlu0 21
        %508 = vperm.xlu0 %507, %v445
        %v509 = vpop.permute.xlu0 %508
        %v511 = vmul.f32 %v509, 0.0
        %v512 = vmul.f32 %v509, %v437
        %v513 = vmul.f32 %v509, %v438
        %517 = vrot.lane.b32.xlu0 %v511, 80
        %v518 = vpop.permute.xlu0 %517
        %519 = vrot.lane.b32.xlu0 %v512, 80
        %v520 = vpop.permute.xlu0 %519
        %521 = vrot.lane.b32.xlu0 %v513, 80
        %v522 = vpop.permute.xlu0 %521
        %vm523 = vcmask 654336
        %v524 = vsel %vm523, %v518, %v520
        %v525 = vsel %vm523, %v520, %v522
        %v529 = vadd.f32 %v504, %v524
        %v530 = vadd.f32 %v505, %v525
        %v531 = vadd.f32 %v506, %v522
        %532 = vset.pattern.permute.xlu0 28
        %533 = vperm.xlu0 %532, %v445
        %v534 = vpop.permute.xlu0 %533
        %v536 = vmul.f32 %v534, %v437
        %v537 = vmul.f32 %v534, %v438
        %v538 = vmul.f32 %v534, 0.0
        %542 = vrot.lane.b32.xlu0 %v536, 64
        %v543 = vpop.permute.xlu0 %542
        %544 = vrot.lane.b32.xlu0 %v537, 64
        %v545 = vpop.permute.xlu0 %544
        %546 = vrot.lane.b32.xlu0 %v538, 64
        %v547 = vpop.permute.xlu0 %546
        %vm548 = vcmask 523264
        %v549 = vsel %vm548, %v543, %v545
        %v550 = vsel %vm548, %v545, %v547
        %v554 = vadd.f32 %v529, %v543
        %v555 = vadd.f32 %v530, %v549
        %v556 = vadd.f32 %v531, %v550
        %557 = vset.pattern.permute.xlu0 35
        %558 = vperm.xlu0 %557, %v445
        %v559 = vpop.permute.xlu0 %558
        %v561 = vmul.f32 %v559, %v437
        %v562 = vmul.f32 %v559, %v438
        %v563 = vmul.f32 %v559, 0.0
        %567 = vrot.lane.b32.xlu0 %v561, 48
        %v568 = vpop.permute.xlu0 %567
        %569 = vrot.lane.b32.xlu0 %v562, 48
        %v570 = vpop.permute.xlu0 %569
        %571 = vrot.lane.b32.xlu0 %v563, 48
        %v572 = vpop.permute.xlu0 %571
        %vm573 = vcmask 392192
        %v574 = vsel %vm573, %v568, %v570
        %v575 = vsel %vm573, %v570, %v572
        %v579 = vadd.f32 %v554, %v568
        %v580 = vadd.f32 %v555, %v574
        %v581 = vadd.f32 %v556, %v575
        %582 = vset.pattern.permute.xlu0 42
        %583 = vperm.xlu0 %582, %v445
        %v584 = vpop.permute.xlu0 %583
        %v586 = vmul.f32 %v584, %v437
        %v587 = vmul.f32 %v584, %v438
        %v588 = vmul.f32 %v584, 0.0
        %592 = vrot.lane.b32.xlu0 %v586, 32
        %v593 = vpop.permute.xlu0 %592
        %594 = vrot.lane.b32.xlu0 %v587, 32
        %v595 = vpop.permute.xlu0 %594
        %596 = vrot.lane.b32.xlu0 %v588, 32
        %v597 = vpop.permute.xlu0 %596
        %vm598 = vcmask 261120
        %v599 = vsel %vm598, %v593, %v595
        %v600 = vsel %vm598, %v595, %v597
        %v604 = vadd.f32 %v579, %v593
        %v605 = vadd.f32 %v580, %v599
        %v606 = vadd.f32 %v581, %v600
        %v607 = vld [vmem:[%s5] ss:$8 sm:$0x3]
        %v609 = vperm.slane %v607, 0
        %v610 = vperm.slane %v607, 1
        %611 = vrot.lane.b32.xlu0 %v609, 77
        %v612 = vpop.permute.xlu0 %611
        %613 = vrot.lane.b32.xlu0 %v610, 77
        %v614 = vpop.permute.xlu0 %613
        %vm615 = vcmask 629760
        %v616 = vsel %vm615, %v612, %v614
        %v620 = vmul.f32 %v604, %v612
        %v621 = vmul.f32 %v605, %v616
        %v622 = vmul.f32 %v606, %v614
        %v623 = vadd.f32 %v620, 0.0
        %v624 = vadd.f32 %v621, 0.0
        %v625 = vadd.f32 %v622, 0.0
        %626 = vset.pattern.permute.xlu0 1
        %627 = vperm.xlu0 %626, %v445
        %v628 = vpop.permute.xlu0 %627
        %v630 = vmul.f32 %v628, 0.0
        %v631 = vmul.f32 %v628, %v437
        %v632 = vmul.f32 %v628, %v438
        %v633 = vadd.f32 %v630, 0.0
        %v634 = vadd.f32 %v631, 0.0
        %v635 = vadd.f32 %v632, 0.0
        %636 = vset.pattern.permute.xlu0 8
        %637 = vperm.xlu0 %636, %v445
        %v638 = vpop.permute.xlu0 %637
        %v640 = vmul.f32 %v638, 0.0
        %v641 = vmul.f32 %v638, %v437
        %v642 = vmul.f32 %v638, %v438
        %646 = vrot.lane.b32.xlu0 %v640, 112
        %v647 = vpop.permute.xlu0 %646
        %648 = vrot.lane.b32.xlu0 %v641, 112
        %v649 = vpop.permute.xlu0 %648
        %650 = vrot.lane.b32.xlu0 %v642, 112
        %v651 = vpop.permute.xlu0 %650
        %v652 = vsel %vm473, %v647, %v649
        %v653 = vsel %vm473, %v649, %v651
        %v657 = vadd.f32 %v633, %v652
        %v658 = vadd.f32 %v634, %v653
        %v659 = vadd.f32 %v635, %v651
        %660 = vset.pattern.permute.xlu0 15
        %661 = vperm.xlu0 %660, %v445
        %v662 = vpop.permute.xlu0 %661
        %v664 = vmul.f32 %v662, 0.0
        %v665 = vmul.f32 %v662, %v437
        %v666 = vmul.f32 %v662, %v438
        %670 = vrot.lane.b32.xlu0 %v664, 96
        %v671 = vpop.permute.xlu0 %670
        %672 = vrot.lane.b32.xlu0 %v665, 96
        %v673 = vpop.permute.xlu0 %672
        %674 = vrot.lane.b32.xlu0 %v666, 96
        %v675 = vpop.permute.xlu0 %674
        %v676 = vsel %vm498, %v671, %v673
        %v677 = vsel %vm498, %v673, %v675
        %v681 = vadd.f32 %v657, %v676
        %v682 = vadd.f32 %v658, %v677
        %v683 = vadd.f32 %v659, %v675
        %684 = vset.pattern.permute.xlu0 22
        %685 = vperm.xlu0 %684, %v445
        %v686 = vpop.permute.xlu0 %685
        %v688 = vmul.f32 %v686, 0.0
        %v689 = vmul.f32 %v686, %v437
        %v690 = vmul.f32 %v686, %v438
        %694 = vrot.lane.b32.xlu0 %v688, 80
        %v695 = vpop.permute.xlu0 %694
        %696 = vrot.lane.b32.xlu0 %v689, 80
        %v697 = vpop.permute.xlu0 %696
        %698 = vrot.lane.b32.xlu0 %v690, 80
        %v699 = vpop.permute.xlu0 %698
        %v700 = vsel %vm523, %v695, %v697
        %v701 = vsel %vm523, %v697, %v699
        %v705 = vadd.f32 %v681, %v700
        %v706 = vadd.f32 %v682, %v701
        %v707 = vadd.f32 %v683, %v699
        %708 = vset.pattern.permute.xlu0 29
        %709 = vperm.xlu0 %708, %v445
        %v710 = vpop.permute.xlu0 %709
        %v712 = vmul.f32 %v710, %v437
        %v713 = vmul.f32 %v710, %v438
        %v714 = vmul.f32 %v710, 0.0
        %718 = vrot.lane.b32.xlu0 %v712, 64
        %v719 = vpop.permute.xlu0 %718
        %720 = vrot.lane.b32.xlu0 %v713, 64
        %v721 = vpop.permute.xlu0 %720
        %722 = vrot.lane.b32.xlu0 %v714, 64
        %v723 = vpop.permute.xlu0 %722
        %v724 = vsel %vm548, %v719, %v721
        %v725 = vsel %vm548, %v721, %v723
        %v729 = vadd.f32 %v705, %v719
        %v730 = vadd.f32 %v706, %v724
        %v731 = vadd.f32 %v707, %v725
        %732 = vset.pattern.permute.xlu0 36
        %733 = vperm.xlu0 %732, %v445
        %v734 = vpop.permute.xlu0 %733
        %v736 = vmul.f32 %v734, %v437
        %v737 = vmul.f32 %v734, %v438
        %v738 = vmul.f32 %v734, 0.0
        %742 = vrot.lane.b32.xlu0 %v736, 48
        %v743 = vpop.permute.xlu0 %742
        %744 = vrot.lane.b32.xlu0 %v737, 48
        %v745 = vpop.permute.xlu0 %744
        %746 = vrot.lane.b32.xlu0 %v738, 48
        %v747 = vpop.permute.xlu0 %746
        %v748 = vsel %vm573, %v743, %v745
        %v749 = vsel %vm573, %v745, %v747
        %v753 = vadd.f32 %v729, %v743
        %v754 = vadd.f32 %v730, %v748
        %v755 = vadd.f32 %v731, %v749
        %756 = vset.pattern.permute.xlu0 43
        %757 = vperm.xlu0 %756, %v445
        %v758 = vpop.permute.xlu0 %757
        %v760 = vmul.f32 %v758, %v437
        %v761 = vmul.f32 %v758, %v438
        %v762 = vmul.f32 %v758, 0.0
        %766 = vrot.lane.b32.xlu0 %v760, 32
        %v767 = vpop.permute.xlu0 %766
        %768 = vrot.lane.b32.xlu0 %v761, 32
        %v769 = vpop.permute.xlu0 %768
        %770 = vrot.lane.b32.xlu0 %v762, 32
        %v771 = vpop.permute.xlu0 %770
        %v772 = vsel %vm598, %v767, %v769
        %v773 = vsel %vm598, %v769, %v771
        %v777 = vadd.f32 %v753, %v767
        %v778 = vadd.f32 %v754, %v772
        %v779 = vadd.f32 %v755, %v773
        %s780 = scalar_lea.vmem %s5, 1
        %v781 = vld [vmem:[%s780] ss:$8 sm:$0x3]
        %v783 = vperm.slane %v781, 0
        %v784 = vperm.slane %v781, 1
        %785 = vrot.lane.b32.xlu0 %v783, 78
        %v786 = vpop.permute.xlu0 %785
        %787 = vrot.lane.b32.xlu0 %v784, 78
        %v788 = vpop.permute.xlu0 %787
        %vm789 = vcmask 637952
        %v790 = vsel %vm789, %v786, %v788
        %v794 = vmul.f32 %v777, %v786
        %v795 = vmul.f32 %v778, %v790
        %v796 = vmul.f32 %v779, %v788
        %800 = vrot.lane.b32.xlu0 %v794, 127
        %v801 = vpop.permute.xlu0 %800
        %802 = vrot.lane.b32.xlu0 %v795, 127
        %v803 = vpop.permute.xlu0 %802
        %804 = vrot.lane.b32.xlu0 %v796, 127
        %v805 = vpop.permute.xlu0 %804
        %vm806 = vcmask 1039360
        %v807 = vsel %vm806, %v801, %v803
        %v808 = vsel %vm806, %v803, %v805
        %v812 = vadd.f32 %v623, %v807
        %v813 = vadd.f32 %v624, %v808
        %v814 = vadd.f32 %v625, %v805
        %815 = vset.pattern.permute.xlu0 2
        %816 = vperm.xlu0 %815, %v445
        %v817 = vpop.permute.xlu0 %816
        %v819 = vmul.f32 %v817, 0.0
        %v820 = vmul.f32 %v817, %v437
        %v821 = vmul.f32 %v817, %v438
        %v822 = vadd.f32 %v819, 0.0
        %v823 = vadd.f32 %v820, 0.0
        %v824 = vadd.f32 %v821, 0.0
        %825 = vset.pattern.permute.xlu0 9
        %826 = vperm.xlu0 %825, %v445
        %v827 = vpop.permute.xlu0 %826
        %v829 = vmul.f32 %v827, 0.0
        %v830 = vmul.f32 %v827, %v437
        %v831 = vmul.f32 %v827, %v438
        %835 = vrot.lane.b32.xlu0 %v829, 112
        %v836 = vpop.permute.xlu0 %835
        %837 = vrot.lane.b32.xlu0 %v830, 112
        %v838 = vpop.permute.xlu0 %837
        %839 = vrot.lane.b32.xlu0 %v831, 112
        %v840 = vpop.permute.xlu0 %839
        %v841 = vsel %vm473, %v836, %v838
        %v842 = vsel %vm473, %v838, %v840
        %v846 = vadd.f32 %v822, %v841
        %v847 = vadd.f32 %v823, %v842
        %v848 = vadd.f32 %v824, %v840
        %849 = vset.pattern.permute.xlu0 16
        %850 = vperm.xlu0 %849, %v445
        %v851 = vpop.permute.xlu0 %850
        %v853 = vmul.f32 %v851, 0.0
        %v854 = vmul.f32 %v851, %v437
        %v855 = vmul.f32 %v851, %v438
        %859 = vrot.lane.b32.xlu0 %v853, 96
        %v860 = vpop.permute.xlu0 %859
        %861 = vrot.lane.b32.xlu0 %v854, 96
        %v862 = vpop.permute.xlu0 %861
        %863 = vrot.lane.b32.xlu0 %v855, 96
        %v864 = vpop.permute.xlu0 %863
        %v865 = vsel %vm498, %v860, %v862
        %v866 = vsel %vm498, %v862, %v864
        %v870 = vadd.f32 %v846, %v865
        %v871 = vadd.f32 %v847, %v866
        %v872 = vadd.f32 %v848, %v864
        %873 = vset.pattern.permute.xlu0 23
        %874 = vperm.xlu0 %873, %v445
        %v875 = vpop.permute.xlu0 %874
        %v877 = vmul.f32 %v875, 0.0
        %v878 = vmul.f32 %v875, %v437
        %v879 = vmul.f32 %v875, %v438
        %883 = vrot.lane.b32.xlu0 %v877, 80
        %v884 = vpop.permute.xlu0 %883
        %885 = vrot.lane.b32.xlu0 %v878, 80
        %v886 = vpop.permute.xlu0 %885
        %887 = vrot.lane.b32.xlu0 %v879, 80
        %v888 = vpop.permute.xlu0 %887
        %v889 = vsel %vm523, %v884, %v886
        %v890 = vsel %vm523, %v886, %v888
        %v894 = vadd.f32 %v870, %v889
        %v895 = vadd.f32 %v871, %v890
        %v896 = vadd.f32 %v872, %v888
        %897 = vset.pattern.permute.xlu0 30
        %898 = vperm.xlu0 %897, %v445
        %v899 = vpop.permute.xlu0 %898
        %v901 = vmul.f32 %v899, %v437
        %v902 = vmul.f32 %v899, %v438
        %v903 = vmul.f32 %v899, 0.0
        %907 = vrot.lane.b32.xlu0 %v901, 64
        %v908 = vpop.permute.xlu0 %907
        %909 = vrot.lane.b32.xlu0 %v902, 64
        %v910 = vpop.permute.xlu0 %909
        %911 = vrot.lane.b32.xlu0 %v903, 64
        %v912 = vpop.permute.xlu0 %911
        %v913 = vsel %vm548, %v908, %v910
        %v914 = vsel %vm548, %v910, %v912
        %v918 = vadd.f32 %v894, %v908
        %v919 = vadd.f32 %v895, %v913
        %v920 = vadd.f32 %v896, %v914
        %921 = vset.pattern.permute.xlu0 37
        %922 = vperm.xlu0 %921, %v445
        %v923 = vpop.permute.xlu0 %922
        %v925 = vmul.f32 %v923, %v437
        %v926 = vmul.f32 %v923, %v438
        %v927 = vmul.f32 %v923, 0.0
        %931 = vrot.lane.b32.xlu0 %v925, 48
        %v932 = vpop.permute.xlu0 %931
        %933 = vrot.lane.b32.xlu0 %v926, 48
        %v934 = vpop.permute.xlu0 %933
        %935 = vrot.lane.b32.xlu0 %v927, 48
        %v936 = vpop.permute.xlu0 %935
        %v937 = vsel %vm573, %v932, %v934
        %v938 = vsel %vm573, %v934, %v936
        %v942 = vadd.f32 %v918, %v932
        %v943 = vadd.f32 %v919, %v937
        %v944 = vadd.f32 %v920, %v938
        %945 = vset.pattern.permute.xlu0 44
        %946 = vperm.xlu0 %945, %v445
        %v947 = vpop.permute.xlu0 %946
        %v949 = vmul.f32 %v947, %v437
        %v950 = vmul.f32 %v947, %v438
        %v951 = vmul.f32 %v947, 0.0
        %955 = vrot.lane.b32.xlu0 %v949, 32
        %v956 = vpop.permute.xlu0 %955
        %957 = vrot.lane.b32.xlu0 %v950, 32
        %v958 = vpop.permute.xlu0 %957
        %959 = vrot.lane.b32.xlu0 %v951, 32
        %v960 = vpop.permute.xlu0 %959
        %v961 = vsel %vm598, %v956, %v958
        %v962 = vsel %vm598, %v958, %v960
        %v966 = vadd.f32 %v942, %v956
        %v967 = vadd.f32 %v943, %v961
        %v968 = vadd.f32 %v944, %v962
        %s969 = scalar_lea.vmem %s5, 2
        %v970 = vld [vmem:[%s969] ss:$8 sm:$0x3]
        %v972 = vperm.slane %v970, 0
        %v973 = vperm.slane %v970, 1
        %974 = vrot.lane.b32.xlu0 %v972, 79
        %v975 = vpop.permute.xlu0 %974
        %976 = vrot.lane.b32.xlu0 %v973, 79
        %v977 = vpop.permute.xlu0 %976
        %vm978 = vcmask 646144
        %v979 = vsel %vm978, %v975, %v977
        %v983 = vmul.f32 %v966, %v975
        %v984 = vmul.f32 %v967, %v979
        %v985 = vmul.f32 %v968, %v977
        %989 = vrot.lane.b32.xlu0 %v983, 126
        %v990 = vpop.permute.xlu0 %989
        %991 = vrot.lane.b32.xlu0 %v984, 126
        %v992 = vpop.permute.xlu0 %991
        %993 = vrot.lane.b32.xlu0 %v985, 126
        %v994 = vpop.permute.xlu0 %993
        %vm995 = vcmask 1031168
        %v996 = vsel %vm995, %v990, %v992
        %v997 = vsel %vm995, %v992, %v994
        %v1001 = vadd.f32 %v812, %v996
        %v1002 = vadd.f32 %v813, %v997
        %v1003 = vadd.f32 %v814, %v994
        %1004 = vset.pattern.permute.xlu0 3
        %1005 = vperm.xlu0 %1004, %v445
        %v1006 = vpop.permute.xlu0 %1005
        %v1008 = vmul.f32 %v1006, 0.0
        %v1009 = vmul.f32 %v1006, %v437
        %v1010 = vmul.f32 %v1006, %v438
        %v1011 = vadd.f32 %v1008, 0.0
        %v1012 = vadd.f32 %v1009, 0.0
        %v1013 = vadd.f32 %v1010, 0.0
        %1014 = vset.pattern.permute.xlu0 10
        %1015 = vperm.xlu0 %1014, %v445
        %v1016 = vpop.permute.xlu0 %1015
        %v1018 = vmul.f32 %v1016, 0.0
        %v1019 = vmul.f32 %v1016, %v437
        %v1020 = vmul.f32 %v1016, %v438
        %1024 = vrot.lane.b32.xlu0 %v1018, 112
        %v1025 = vpop.permute.xlu0 %1024
        %1026 = vrot.lane.b32.xlu0 %v1019, 112
        %v1027 = vpop.permute.xlu0 %1026
        %1028 = vrot.lane.b32.xlu0 %v1020, 112
        %v1029 = vpop.permute.xlu0 %1028
        %v1030 = vsel %vm473, %v1025, %v1027
        %v1031 = vsel %vm473, %v1027, %v1029
        %v1035 = vadd.f32 %v1011, %v1030
        %v1036 = vadd.f32 %v1012, %v1031
        %v1037 = vadd.f32 %v1013, %v1029
        %1038 = vset.pattern.permute.xlu0 17
        %1039 = vperm.xlu0 %1038, %v445
        %v1040 = vpop.permute.xlu0 %1039
        %v1042 = vmul.f32 %v1040, 0.0
        %v1043 = vmul.f32 %v1040, %v437
        %v1044 = vmul.f32 %v1040, %v438
        %1048 = vrot.lane.b32.xlu0 %v1042, 96
        %v1049 = vpop.permute.xlu0 %1048
        %1050 = vrot.lane.b32.xlu0 %v1043, 96
        %v1051 = vpop.permute.xlu0 %1050
        %1052 = vrot.lane.b32.xlu0 %v1044, 96
        %v1053 = vpop.permute.xlu0 %1052
        %v1054 = vsel %vm498, %v1049, %v1051
        %v1055 = vsel %vm498, %v1051, %v1053
        %v1059 = vadd.f32 %v1035, %v1054
        %v1060 = vadd.f32 %v1036, %v1055
        %v1061 = vadd.f32 %v1037, %v1053
        %1062 = vset.pattern.permute.xlu0 24
        %1063 = vperm.xlu0 %1062, %v445
        %v1064 = vpop.permute.xlu0 %1063
        %v1066 = vmul.f32 %v1064, %v437
        %v1067 = vmul.f32 %v1064, %v438
        %1070 = vrot.lane.b32.xlu0 %v1066, 80
        %v1071 = vpop.permute.xlu0 %1070
        %1072 = vrot.lane.b32.xlu0 %v1067, 80
        %v1073 = vpop.permute.xlu0 %1072
        %v1074 = vsel %vm523, %v1071, %v1073
        %v1078 = vadd.f32 %v1059, %v1071
        %v1079 = vadd.f32 %v1060, %v1074
        %v1080 = vadd.f32 %v1061, %v1073
        %1081 = vset.pattern.permute.xlu0 31
        %1082 = vperm.xlu0 %1081, %v445
        %v1083 = vpop.permute.xlu0 %1082
        %v1085 = vmul.f32 %v1083, %v437
        %v1086 = vmul.f32 %v1083, %v438
        %v1087 = vmul.f32 %v1083, 0.0
        %1091 = vrot.lane.b32.xlu0 %v1085, 64
        %v1092 = vpop.permute.xlu0 %1091
        %1093 = vrot.lane.b32.xlu0 %v1086, 64
        %v1094 = vpop.permute.xlu0 %1093
        %1095 = vrot.lane.b32.xlu0 %v1087, 64
        %v1096 = vpop.permute.xlu0 %1095
        %v1097 = vsel %vm548, %v1092, %v1094
        %v1098 = vsel %vm548, %v1094, %v1096
        %v1102 = vadd.f32 %v1078, %v1092
        %v1103 = vadd.f32 %v1079, %v1097
        %v1104 = vadd.f32 %v1080, %v1098
        %1105 = vset.pattern.permute.xlu0 38
        %1106 = vperm.xlu0 %1105, %v445
        %v1107 = vpop.permute.xlu0 %1106
        %v1109 = vmul.f32 %v1107, %v437
        %v1110 = vmul.f32 %v1107, %v438
        %v1111 = vmul.f32 %v1107, 0.0
        %1115 = vrot.lane.b32.xlu0 %v1109, 48
        %v1116 = vpop.permute.xlu0 %1115
        %1117 = vrot.lane.b32.xlu0 %v1110, 48
        %v1118 = vpop.permute.xlu0 %1117
        %1119 = vrot.lane.b32.xlu0 %v1111, 48
        %v1120 = vpop.permute.xlu0 %1119
        %v1121 = vsel %vm573, %v1116, %v1118
        %v1122 = vsel %vm573, %v1118, %v1120
        %v1126 = vadd.f32 %v1102, %v1116
        %v1127 = vadd.f32 %v1103, %v1121
        %v1128 = vadd.f32 %v1104, %v1122
        %1129 = vset.pattern.permute.xlu0 45
        %1130 = vperm.xlu0 %1129, %v445
        %v1131 = vpop.permute.xlu0 %1130
        %v1133 = vmul.f32 %v1131, %v437
        %v1134 = vmul.f32 %v1131, %v438
        %v1135 = vmul.f32 %v1131, 0.0
        %1139 = vrot.lane.b32.xlu0 %v1133, 32
        %v1140 = vpop.permute.xlu0 %1139
        %1141 = vrot.lane.b32.xlu0 %v1134, 32
        %v1142 = vpop.permute.xlu0 %1141
        %1143 = vrot.lane.b32.xlu0 %v1135, 32
        %v1144 = vpop.permute.xlu0 %1143
        %v1145 = vsel %vm598, %v1140, %v1142
        %v1146 = vsel %vm598, %v1142, %v1144
        %v1150 = vadd.f32 %v1126, %v1140
        %v1151 = vadd.f32 %v1127, %v1145
        %v1152 = vadd.f32 %v1128, %v1146
        %1156 = vrot.lane.b32.xlu0 %v1150, 125
        %v1157 = vpop.permute.xlu0 %1156
        %1158 = vrot.lane.b32.xlu0 %v1151, 125
        %v1159 = vpop.permute.xlu0 %1158
        %1160 = vrot.lane.b32.xlu0 %v1152, 125
        %v1161 = vpop.permute.xlu0 %1160
        %vm1162 = vcmask 1022976
        %v1163 = vsel %vm1162, %v1157, %v1159
        %v1164 = vsel %vm1162, %v1159, %v1161
        %v1168 = vadd.f32 %v1001, %v1163
        %v1169 = vadd.f32 %v1002, %v1164
        %v1170 = vadd.f32 %v1003, %v1161
        %1171 = vset.pattern.permute.xlu0 4
        %1172 = vperm.xlu0 %1171, %v445
        %v1173 = vpop.permute.xlu0 %1172
        %v1175 = vmul.f32 %v1173, 0.0
        %v1176 = vmul.f32 %v1173, %v437
        %v1177 = vmul.f32 %v1173, %v438
        %v1178 = vadd.f32 %v1175, 0.0
        %v1179 = vadd.f32 %v1176, 0.0
        %v1180 = vadd.f32 %v1177, 0.0
        %1181 = vset.pattern.permute.xlu0 11
        %1182 = vperm.xlu0 %1181, %v445
        %v1183 = vpop.permute.xlu0 %1182
        %v1185 = vmul.f32 %v1183, 0.0
        %v1186 = vmul.f32 %v1183, %v437
        %v1187 = vmul.f32 %v1183, %v438
        %1191 = vrot.lane.b32.xlu0 %v1185, 112
        %v1192 = vpop.permute.xlu0 %1191
        %1193 = vrot.lane.b32.xlu0 %v1186, 112
        %v1194 = vpop.permute.xlu0 %1193
        %1195 = vrot.lane.b32.xlu0 %v1187, 112
        %v1196 = vpop.permute.xlu0 %1195
        %v1197 = vsel %vm473, %v1192, %v1194
        %v1198 = vsel %vm473, %v1194, %v1196
        %v1202 = vadd.f32 %v1178, %v1197
        %v1203 = vadd.f32 %v1179, %v1198
        %v1204 = vadd.f32 %v1180, %v1196
        %1205 = vset.pattern.permute.xlu0 18
        %1206 = vperm.xlu0 %1205, %v445
        %v1207 = vpop.permute.xlu0 %1206
        %v1209 = vmul.f32 %v1207, 0.0
        %v1210 = vmul.f32 %v1207, %v437
        %v1211 = vmul.f32 %v1207, %v438
        %1215 = vrot.lane.b32.xlu0 %v1209, 96
        %v1216 = vpop.permute.xlu0 %1215
        %1217 = vrot.lane.b32.xlu0 %v1210, 96
        %v1218 = vpop.permute.xlu0 %1217
        %1219 = vrot.lane.b32.xlu0 %v1211, 96
        %v1220 = vpop.permute.xlu0 %1219
        %v1221 = vsel %vm498, %v1216, %v1218
        %v1222 = vsel %vm498, %v1218, %v1220
        %v1226 = vadd.f32 %v1202, %v1221
        %v1227 = vadd.f32 %v1203, %v1222
        %v1228 = vadd.f32 %v1204, %v1220
        %1229 = vset.pattern.permute.xlu0 25
        %1230 = vperm.xlu0 %1229, %v445
        %v1231 = vpop.permute.xlu0 %1230
        %v1233 = vmul.f32 %v1231, %v437
        %v1234 = vmul.f32 %v1231, %v438
        %v1235 = vmul.f32 %v1231, 0.0
        %1239 = vrot.lane.b32.xlu0 %v1233, 80
        %v1240 = vpop.permute.xlu0 %1239
        %1241 = vrot.lane.b32.xlu0 %v1234, 80
        %v1242 = vpop.permute.xlu0 %1241
        %1243 = vrot.lane.b32.xlu0 %v1235, 80
        %v1244 = vpop.permute.xlu0 %1243
        %v1245 = vsel %vm523, %v1240, %v1242
        %v1246 = vsel %vm523, %v1242, %v1244
        %v1250 = vadd.f32 %v1226, %v1240
        %v1251 = vadd.f32 %v1227, %v1245
        %v1252 = vadd.f32 %v1228, %v1246
        %1253 = vset.pattern.permute.xlu0 32
        %1254 = vperm.xlu0 %1253, %v445
        %v1255 = vpop.permute.xlu0 %1254
        %v1257 = vmul.f32 %v1255, %v437
        %v1258 = vmul.f32 %v1255, %v438
        %v1259 = vmul.f32 %v1255, 0.0
        %1263 = vrot.lane.b32.xlu0 %v1257, 64
        %v1264 = vpop.permute.xlu0 %1263
        %1265 = vrot.lane.b32.xlu0 %v1258, 64
        %v1266 = vpop.permute.xlu0 %1265
        %1267 = vrot.lane.b32.xlu0 %v1259, 64
        %v1268 = vpop.permute.xlu0 %1267
        %v1269 = vsel %vm548, %v1264, %v1266
        %v1270 = vsel %vm548, %v1266, %v1268
        %v1274 = vadd.f32 %v1250, %v1264
        %v1275 = vadd.f32 %v1251, %v1269
        %v1276 = vadd.f32 %v1252, %v1270
        %1277 = vset.pattern.permute.xlu0 39
        %1278 = vperm.xlu0 %1277, %v445
        %v1279 = vpop.permute.xlu0 %1278
        %v1281 = vmul.f32 %v1279, %v437
        %v1282 = vmul.f32 %v1279, %v438
        %v1283 = vmul.f32 %v1279, 0.0
        %1287 = vrot.lane.b32.xlu0 %v1281, 48
        %v1288 = vpop.permute.xlu0 %1287
        %1289 = vrot.lane.b32.xlu0 %v1282, 48
        %v1290 = vpop.permute.xlu0 %1289
        %1291 = vrot.lane.b32.xlu0 %v1283, 48
        %v1292 = vpop.permute.xlu0 %1291
        %v1293 = vsel %vm573, %v1288, %v1290
        %v1294 = vsel %vm573, %v1290, %v1292
        %v1298 = vadd.f32 %v1274, %v1288
        %v1299 = vadd.f32 %v1275, %v1293
        %v1300 = vadd.f32 %v1276, %v1294
        %1301 = vset.pattern.permute.xlu0 46
        %1302 = vperm.xlu0 %1301, %v445
        %v1303 = vpop.permute.xlu0 %1302
        %v1305 = vmul.f32 %v1303, %v437
        %v1306 = vmul.f32 %v1303, %v438
        %v1307 = vmul.f32 %v1303, 0.0
        %1311 = vrot.lane.b32.xlu0 %v1305, 32
        %v1312 = vpop.permute.xlu0 %1311
        %1313 = vrot.lane.b32.xlu0 %v1306, 32
        %v1314 = vpop.permute.xlu0 %1313
        %1315 = vrot.lane.b32.xlu0 %v1307, 32
        %v1316 = vpop.permute.xlu0 %1315
        %v1317 = vsel %vm598, %v1312, %v1314
        %v1318 = vsel %vm598, %v1314, %v1316
        %v1322 = vadd.f32 %v1298, %v1312
        %v1323 = vadd.f32 %v1299, %v1317
        %v1324 = vadd.f32 %v1300, %v1318
        %s1325 = scalar_lea.vmem %s5, 4
        %v1326 = vld [vmem:[%s1325] ss:$8 sm:$0x3]
        %v1328 = vperm.slane %v1326, 0
        %v1329 = vperm.slane %v1326, 1
        %1330 = vrot.lane.b32.xlu0 %v1328, 81
        %v1331 = vpop.permute.xlu0 %1330
        %1332 = vrot.lane.b32.xlu0 %v1329, 81
        %v1333 = vpop.permute.xlu0 %1332
        %vm1334 = vcmask 662528
        %v1335 = vsel %vm1334, %v1331, %v1333
        %v1339 = vmul.f32 %v1322, %v1331
        %v1340 = vmul.f32 %v1323, %v1335
        %v1341 = vmul.f32 %v1324, %v1333
        %1345 = vrot.lane.b32.xlu0 %v1339, 124
        %v1346 = vpop.permute.xlu0 %1345
        %1347 = vrot.lane.b32.xlu0 %v1340, 124
        %v1348 = vpop.permute.xlu0 %1347
        %1349 = vrot.lane.b32.xlu0 %v1341, 124
        %v1350 = vpop.permute.xlu0 %1349
        %vm1351 = vcmask 1014784
        %v1352 = vsel %vm1351, %v1346, %v1348
        %v1353 = vsel %vm1351, %v1348, %v1350
        %v1357 = vadd.f32 %v1168, %v1352
        %v1358 = vadd.f32 %v1169, %v1353
        %v1359 = vadd.f32 %v1170, %v1350
        %1360 = vset.pattern.permute.xlu0 5
        %1361 = vperm.xlu0 %1360, %v445
        %v1362 = vpop.permute.xlu0 %1361
        %v1364 = vmul.f32 %v1362, 0.0
        %v1365 = vmul.f32 %v1362, %v437
        %v1366 = vmul.f32 %v1362, %v438
        %v1367 = vadd.f32 %v1364, 0.0
        %v1368 = vadd.f32 %v1365, 0.0
        %v1369 = vadd.f32 %v1366, 0.0
        %1370 = vset.pattern.permute.xlu0 12
        %1371 = vperm.xlu0 %1370, %v445
        %v1372 = vpop.permute.xlu0 %1371
        %v1374 = vmul.f32 %v1372, 0.0
        %v1375 = vmul.f32 %v1372, %v437
        %v1376 = vmul.f32 %v1372, %v438
        %1380 = vrot.lane.b32.xlu0 %v1374, 112
        %v1381 = vpop.permute.xlu0 %1380
        %1382 = vrot.lane.b32.xlu0 %v1375, 112
        %v1383 = vpop.permute.xlu0 %1382
        %1384 = vrot.lane.b32.xlu0 %v1376, 112
        %v1385 = vpop.permute.xlu0 %1384
        %v1386 = vsel %vm473, %v1381, %v1383
        %v1387 = vsel %vm473, %v1383, %v1385
        %v1391 = vadd.f32 %v1367, %v1386
        %v1392 = vadd.f32 %v1368, %v1387
        %v1393 = vadd.f32 %v1369, %v1385
        %1394 = vset.pattern.permute.xlu0 19
        %1395 = vperm.xlu0 %1394, %v445
        %v1396 = vpop.permute.xlu0 %1395
        %v1398 = vmul.f32 %v1396, 0.0
        %v1399 = vmul.f32 %v1396, %v437
        %v1400 = vmul.f32 %v1396, %v438
        %1404 = vrot.lane.b32.xlu0 %v1398, 96
        %v1405 = vpop.permute.xlu0 %1404
        %1406 = vrot.lane.b32.xlu0 %v1399, 96
        %v1407 = vpop.permute.xlu0 %1406
        %1408 = vrot.lane.b32.xlu0 %v1400, 96
        %v1409 = vpop.permute.xlu0 %1408
        %v1410 = vsel %vm498, %v1405, %v1407
        %v1411 = vsel %vm498, %v1407, %v1409
        %v1415 = vadd.f32 %v1391, %v1410
        %v1416 = vadd.f32 %v1392, %v1411
        %v1417 = vadd.f32 %v1393, %v1409
        %1418 = vset.pattern.permute.xlu0 26
        %1419 = vperm.xlu0 %1418, %v445
        %v1420 = vpop.permute.xlu0 %1419
        %v1422 = vmul.f32 %v1420, %v437
        %v1423 = vmul.f32 %v1420, %v438
        %v1424 = vmul.f32 %v1420, 0.0
        %1428 = vrot.lane.b32.xlu0 %v1422, 80
        %v1429 = vpop.permute.xlu0 %1428
        %1430 = vrot.lane.b32.xlu0 %v1423, 80
        %v1431 = vpop.permute.xlu0 %1430
        %1432 = vrot.lane.b32.xlu0 %v1424, 80
        %v1433 = vpop.permute.xlu0 %1432
        %v1434 = vsel %vm523, %v1429, %v1431
        %v1435 = vsel %vm523, %v1431, %v1433
        %v1439 = vadd.f32 %v1415, %v1429
        %v1440 = vadd.f32 %v1416, %v1434
        %v1441 = vadd.f32 %v1417, %v1435
        %1442 = vset.pattern.permute.xlu0 33
        %1443 = vperm.xlu0 %1442, %v445
        %v1444 = vpop.permute.xlu0 %1443
        %v1446 = vmul.f32 %v1444, %v437
        %v1447 = vmul.f32 %v1444, %v438
        %v1448 = vmul.f32 %v1444, 0.0
        %1452 = vrot.lane.b32.xlu0 %v1446, 64
        %v1453 = vpop.permute.xlu0 %1452
        %1454 = vrot.lane.b32.xlu0 %v1447, 64
        %v1455 = vpop.permute.xlu0 %1454
        %1456 = vrot.lane.b32.xlu0 %v1448, 64
        %v1457 = vpop.permute.xlu0 %1456
        %v1458 = vsel %vm548, %v1453, %v1455
        %v1459 = vsel %vm548, %v1455, %v1457
        %v1463 = vadd.f32 %v1439, %v1453
        %v1464 = vadd.f32 %v1440, %v1458
        %v1465 = vadd.f32 %v1441, %v1459
        %1466 = vset.pattern.permute.xlu0 40
        %1467 = vperm.xlu0 %1466, %v445
        %v1468 = vpop.permute.xlu0 %1467
        %v1470 = vmul.f32 %v1468, %v437
        %v1471 = vmul.f32 %v1468, %v438
        %v1472 = vmul.f32 %v1468, 0.0
        %1476 = vrot.lane.b32.xlu0 %v1470, 48
        %v1477 = vpop.permute.xlu0 %1476
        %1478 = vrot.lane.b32.xlu0 %v1471, 48
        %v1479 = vpop.permute.xlu0 %1478
        %1480 = vrot.lane.b32.xlu0 %v1472, 48
        %v1481 = vpop.permute.xlu0 %1480
        %v1482 = vsel %vm573, %v1477, %v1479
        %v1483 = vsel %vm573, %v1479, %v1481
        %v1487 = vadd.f32 %v1463, %v1477
        %v1488 = vadd.f32 %v1464, %v1482
        %v1489 = vadd.f32 %v1465, %v1483
        %1490 = vset.pattern.permute.xlu0 47
        %1491 = vperm.xlu0 %1490, %v445
        %v1492 = vpop.permute.xlu0 %1491
        %v1494 = vmul.f32 %v1492, %v437
        %v1495 = vmul.f32 %v1492, %v438
        %v1496 = vmul.f32 %v1492, 0.0
        %1500 = vrot.lane.b32.xlu0 %v1494, 32
        %v1501 = vpop.permute.xlu0 %1500
        %1502 = vrot.lane.b32.xlu0 %v1495, 32
        %v1503 = vpop.permute.xlu0 %1502
        %1504 = vrot.lane.b32.xlu0 %v1496, 32
        %v1505 = vpop.permute.xlu0 %1504
        %v1506 = vsel %vm598, %v1501, %v1503
        %v1507 = vsel %vm598, %v1503, %v1505
        %v1511 = vadd.f32 %v1487, %v1501
        %v1512 = vadd.f32 %v1488, %v1506
        %v1513 = vadd.f32 %v1489, %v1507
        %s1514 = scalar_lea.vmem %s5, 5
        %v1515 = vld [vmem:[%s1514] ss:$8 sm:$0x3]
        %v1517 = vperm.slane %v1515, 0
        %v1518 = vperm.slane %v1515, 1
        %1519 = vrot.lane.b32.xlu0 %v1517, 82
        %v1520 = vpop.permute.xlu0 %1519
        %1521 = vrot.lane.b32.xlu0 %v1518, 82
        %v1522 = vpop.permute.xlu0 %1521
        %vm1523 = vcmask 670720
        %v1524 = vsel %vm1523, %v1520, %v1522
        %v1528 = vmul.f32 %v1511, %v1520
        %v1529 = vmul.f32 %v1512, %v1524
        %v1530 = vmul.f32 %v1513, %v1522
        %1534 = vrot.lane.b32.xlu0 %v1528, 123
        %v1535 = vpop.permute.xlu0 %1534
        %1536 = vrot.lane.b32.xlu0 %v1529, 123
        %v1537 = vpop.permute.xlu0 %1536
        %1538 = vrot.lane.b32.xlu0 %v1530, 123
        %v1539 = vpop.permute.xlu0 %1538
        %vm1540 = vcmask 1006592
        %v1541 = vsel %vm1540, %v1535, %v1537
        %v1542 = vsel %vm1540, %v1537, %v1539
        %v1546 = vadd.f32 %v1357, %v1541
        %v1547 = vadd.f32 %v1358, %v1542
        %v1548 = vadd.f32 %v1359, %v1539
        %1549 = vset.pattern.permute.xlu0 6
        %1550 = vperm.xlu0 %1549, %v445
        %v1551 = vpop.permute.xlu0 %1550
        %v1553 = vmul.f32 %v1551, 0.0
        %v1554 = vmul.f32 %v1551, %v437
        %v1555 = vmul.f32 %v1551, %v438
        %v1556 = vadd.f32 %v1553, 0.0
        %v1557 = vadd.f32 %v1554, 0.0
        %v1558 = vadd.f32 %v1555, 0.0
        %1559 = vset.pattern.permute.xlu0 13
        %1560 = vperm.xlu0 %1559, %v445
        %v1561 = vpop.permute.xlu0 %1560
        %v1563 = vmul.f32 %v1561, 0.0
        %v1564 = vmul.f32 %v1561, %v437
        %v1565 = vmul.f32 %v1561, %v438
        %1569 = vrot.lane.b32.xlu0 %v1563, 112
        %v1570 = vpop.permute.xlu0 %1569
        %1571 = vrot.lane.b32.xlu0 %v1564, 112
        %v1572 = vpop.permute.xlu0 %1571
        %1573 = vrot.lane.b32.xlu0 %v1565, 112
        %v1574 = vpop.permute.xlu0 %1573
        %v1575 = vsel %vm473, %v1570, %v1572
        %v1576 = vsel %vm473, %v1572, %v1574
        %v1580 = vadd.f32 %v1556, %v1575
        %v1581 = vadd.f32 %v1557, %v1576
        %v1582 = vadd.f32 %v1558, %v1574
        %1583 = vset.pattern.permute.xlu0 20
        %1584 = vperm.xlu0 %1583, %v445
        %v1585 = vpop.permute.xlu0 %1584
        %v1587 = vmul.f32 %v1585, 0.0
        %v1588 = vmul.f32 %v1585, %v437
        %v1589 = vmul.f32 %v1585, %v438
        %1593 = vrot.lane.b32.xlu0 %v1587, 96
        %v1594 = vpop.permute.xlu0 %1593
        %1595 = vrot.lane.b32.xlu0 %v1588, 96
        %v1596 = vpop.permute.xlu0 %1595
        %1597 = vrot.lane.b32.xlu0 %v1589, 96
        %v1598 = vpop.permute.xlu0 %1597
        %v1599 = vsel %vm498, %v1594, %v1596
        %v1600 = vsel %vm498, %v1596, %v1598
        %v1604 = vadd.f32 %v1580, %v1599
        %v1605 = vadd.f32 %v1581, %v1600
        %v1606 = vadd.f32 %v1582, %v1598
        %1607 = vset.pattern.permute.xlu0 27
        %1608 = vperm.xlu0 %1607, %v445
        %v1609 = vpop.permute.xlu0 %1608
        %v1611 = vmul.f32 %v1609, %v437
        %v1612 = vmul.f32 %v1609, %v438
        %v1613 = vmul.f32 %v1609, 0.0
        %1617 = vrot.lane.b32.xlu0 %v1611, 80
        %v1618 = vpop.permute.xlu0 %1617
        %1619 = vrot.lane.b32.xlu0 %v1612, 80
        %v1620 = vpop.permute.xlu0 %1619
        %1621 = vrot.lane.b32.xlu0 %v1613, 80
        %v1622 = vpop.permute.xlu0 %1621
        %v1623 = vsel %vm523, %v1618, %v1620
        %v1624 = vsel %vm523, %v1620, %v1622
        %v1628 = vadd.f32 %v1604, %v1618
        %v1629 = vadd.f32 %v1605, %v1623
        %v1630 = vadd.f32 %v1606, %v1624
        %1631 = vset.pattern.permute.xlu0 34
        %1632 = vperm.xlu0 %1631, %v445
        %v1633 = vpop.permute.xlu0 %1632
        %v1635 = vmul.f32 %v1633, %v437
        %v1636 = vmul.f32 %v1633, %v438
        %v1637 = vmul.f32 %v1633, 0.0
        %1641 = vrot.lane.b32.xlu0 %v1635, 64
        %v1642 = vpop.permute.xlu0 %1641
        %1643 = vrot.lane.b32.xlu0 %v1636, 64
        %v1644 = vpop.permute.xlu0 %1643
        %1645 = vrot.lane.b32.xlu0 %v1637, 64
        %v1646 = vpop.permute.xlu0 %1645
        %v1647 = vsel %vm548, %v1642, %v1644
        %v1648 = vsel %vm548, %v1644, %v1646
        %v1652 = vadd.f32 %v1628, %v1642
        %v1653 = vadd.f32 %v1629, %v1647
        %v1654 = vadd.f32 %v1630, %v1648
        %1655 = vset.pattern.permute.xlu0 41
        %1656 = vperm.xlu0 %1655, %v445
        %v1657 = vpop.permute.xlu0 %1656
        %v1659 = vmul.f32 %v1657, %v437
        %v1660 = vmul.f32 %v1657, %v438
        %v1661 = vmul.f32 %v1657, 0.0
        %1665 = vrot.lane.b32.xlu0 %v1659, 48
        %v1666 = vpop.permute.xlu0 %1665
        %1667 = vrot.lane.b32.xlu0 %v1660, 48
        %v1668 = vpop.permute.xlu0 %1667
        %1669 = vrot.lane.b32.xlu0 %v1661, 48
        %v1670 = vpop.permute.xlu0 %1669
        %v1671 = vsel %vm573, %v1666, %v1668
        %v1672 = vsel %vm573, %v1668, %v1670
        %v1676 = vadd.f32 %v1652, %v1666
        %v1677 = vadd.f32 %v1653, %v1671
        %v1678 = vadd.f32 %v1654, %v1672
        %1679 = vset.pattern.permute.xlu0 48
        %1680 = vperm.xlu0 %1679, %v445
        %v1681 = vpop.permute.xlu0 %1680
        %v1683 = vmul.f32 %v1681, %v437
        %v1684 = vmul.f32 %v1681, %v438
        %v1685 = vmul.f32 %v1681, 0.0
        %1689 = vrot.lane.b32.xlu0 %v1683, 32
        %v1690 = vpop.permute.xlu0 %1689
        %1691 = vrot.lane.b32.xlu0 %v1684, 32
        %v1692 = vpop.permute.xlu0 %1691
        %1693 = vrot.lane.b32.xlu0 %v1685, 32
        %v1694 = vpop.permute.xlu0 %1693
        %v1695 = vsel %vm598, %v1690, %v1692
        %v1696 = vsel %vm598, %v1692, %v1694
        %v1700 = vadd.f32 %v1676, %v1690
        %v1701 = vadd.f32 %v1677, %v1695
        %v1702 = vadd.f32 %v1678, %v1696
        %s1703 = scalar_lea.vmem %s5, 6
        %v1704 = vld [vmem:[%s1703] ss:$8 sm:$0x3]
        %v1706 = vperm.slane %v1704, 0
        %v1707 = vperm.slane %v1704, 1
        %1708 = vrot.lane.b32.xlu0 %v1706, 83
        %v1709 = vpop.permute.xlu0 %1708
        %1710 = vrot.lane.b32.xlu0 %v1707, 83
        %v1711 = vpop.permute.xlu0 %1710
        %vm1712 = vcmask 678912
        %v1713 = vsel %vm1712, %v1709, %v1711
        %v1717 = vmul.f32 %v1700, %v1709
        %v1718 = vmul.f32 %v1701, %v1713
        %v1719 = vmul.f32 %v1702, %v1711
        %1723 = vrot.lane.b32.xlu0 %v1717, 122
        %v1724 = vpop.permute.xlu0 %1723
        %1725 = vrot.lane.b32.xlu0 %v1718, 122
        %v1726 = vpop.permute.xlu0 %1725
        %1727 = vrot.lane.b32.xlu0 %v1719, 122
        %v1728 = vpop.permute.xlu0 %1727
        %vm1729 = vcmask 998400
        %v1730 = vsel %vm1729, %v1724, %v1726
        %v1731 = vsel %vm1729, %v1726, %v1728
        %v1735 = vadd.f32 %v1546, %v1730
        %v1736 = vadd.f32 %v1547, %v1731
        %v1737 = vadd.f32 %v1548, %v1728
        %1738 = vset.pattern.permute.xlu0 4
        %1739 = vperm.xlu0 %1738, %v301
        %v1740 = vpop.permute.xlu0 %1739
        %v1742 = vadd.f32 %v1735, %v1740
        %v1743 = vadd.f32 %v1736, %v1740
        %v1744 = vadd.f32 %v1737, %v1740
        %1748 = vrot.lane.b32.xlu0 %v1742, 51
        %v1749 = vpop.permute.xlu0 %1748
        %1750 = vrot.lane.b32.xlu0 %v1743, 51
        %v1751 = vpop.permute.xlu0 %1750
        %1752 = vrot.lane.b32.xlu0 %v1744, 51
        %v1753 = vpop.permute.xlu0 %1752
        %vm1754 = vcmask 416768
        %v1755 = vsel %vm1754, %v1749, %v1751
        %v1756 = vsel %vm1754, %v1751, %v1753
        %v1759 = vmul.f32 %v443, %v1755
        %v1760 = vmul.f32 %v444, %v1756
        %v1761 = vld [vmem:[#allocation7] sm:$0xff]
        %1762 = vset.pattern.permute.xlu0 5
        %1763 = vperm.xlu0 %1762, %v301
        %v1764 = vpop.permute.xlu0 %1763
        %v1767 = vsel %vm380, %v1761, 0
        %1769 = vmatpush.msra.mxu0 0.0
        %1770 = vmatpush.msra.mxu0 0.0
        %1771 = vmatpush.msra.mxu0 0.0
        %1772 = vmatpush.msra.mxu0 0.0
        %1773 = vmatpush.msra.mxu0 0.0
        %1774 = vmatpush.msra.mxu0 0.0
        %1775 = vmatpush.msra.mxu0 0.0
        %1776 = vmatpush.msra.mxu0 0.0
        %1777 = vmatpush.msra.mxu0 0.0
        %1778 = vmatpush.msra.mxu0 0.0
        %1779 = vmatpush.msra.mxu0 0.0
        %1780 = vmatpush.msra.mxu0 0.0
        %1781 = vmatpush.msra.mxu0 0.0
        %1782 = vmatpush.msra.mxu0 0.0
        %1783 = vmatpush.msra.mxu0 0.0
        %1784 = vmatpush.msra.mxu0 %v1759
        %1785 = vmatmul.f32.gmra.mxu0 %v1767
        %v1786 = vpop.f32.mrf.mxu0
        %v1787 = vadd.f32 %v1764, %v1786
        %1788 = vdwg.mxu0
        %1789 = vmatpush.msra.mxu0 0.0
        %1790 = vmatpush.msra.mxu0 0.0
        %1791 = vmatpush.msra.mxu0 0.0
        %1792 = vmatpush.msra.mxu0 0.0
        %1793 = vmatpush.msra.mxu0 0.0
        %1794 = vmatpush.msra.mxu0 0.0
        %1795 = vmatpush.msra.mxu0 0.0
        %1796 = vmatpush.msra.mxu0 0.0
        %1797 = vmatpush.msra.mxu0 0.0
        %1798 = vmatpush.msra.mxu0 0.0
        %1799 = vmatpush.msra.mxu0 0.0
        %1800 = vmatpush.msra.mxu0 0.0
        %1801 = vmatpush.msra.mxu0 0.0
        %1802 = vmatpush.msra.mxu0 0.0
        %1803 = vmatpush.msra.mxu0 0.0
        %1804 = vmatpush.msra.mxu0 %v1760
        %1805 = vmatmul.f32.gmra.mxu0 %v1767
        %v1806 = vpop.f32.mrf.mxu0
        %v1807 = vadd.f32 %v1764, %v1806
        %1808 = vdwg.mxu0
        %1809 = vset.pattern.permute.xlu0 6
        %1810 = vperm.xlu0 %1809, %v301
        %v1811 = vpop.permute.xlu0 %1810
        %v1813 = vmul.f32 %v1787, %v1811
        %v1814 = vmul.f32 %v1807, %v1811
        %v1815 = vadd.f32 %v1813, %v299
        %v1816 = vadd.f32 %v1814, %v300
        %1817 = vst [vmem:[%s298] sm:$0xff] %v1815
        %1818 = vst [vmem:[%s298 + $0x8] sm:$0xff] %v1816
        %s1819 = sand.u32 %s163, 1
        %s1820 = scalar_lea.sflag [#allocation4], %s1819
        %s1821 = sand.u32 %s163, 1
        %s1822 = smul.addr %s1821, 16
        %s1823 = scalar_lea.vmem [#allocation8], %s1822
        // Predicated region
        $region57: #{tpu_custom_call.1} parent=43 // pred_check
          %p1824 = pneg %p173
        $region58: #{tpu_custom_call.1} parent=43 // pred_check_branch
          %1826 = sbr.rel (%p1824) target = $region60
        $region59: #{tpu_custom_call.1} parent=43 // pred_region
          %1828 = vsyncadd %s1820, 0
          %s1829 = smul.addr %s24, 2
          %s1830 = smul.addr %s1829, 8
          %s1831 = scalar_lea.hbm %s6, %s1830
          %s1833 = sshll.u32 %s1823, 4
          %s1834 = int_to_ptr.vmem [resolvable:$true] %s1833
          %s1835 = sshll.u32 %s1831, 4
          %s1836 = int_to_ptr.hbm [resolvable:$true] %s1835
          %1838 = dma.vmem_to_hbm [thread:$0]  %s1834, 256, %s1836, %s1820
        $region60: #{tpu_custom_call.1} parent=43 // pred_fallthru
          _
      $region44: #{tpu_custom_call.1} parent=5 // pred_fallthru
        _
      %p1839 = scmp.le.s32.totalorder 2, %s19
      // Predicated region
      $region61: #{tpu_custom_call.1} parent=5 // pred_check
        %p1840 = pneg %p1839
      $region62: #{tpu_custom_call.1} parent=5 // pred_check_branch
        %1842 = sbr.rel (%p1840) target = $region64
      $region63: #{tpu_custom_call.1} parent=5 // pred_region
        %s1843 = ssub.s32 %s19, 2
        // Predicated region
        $region65: #{tpu_custom_call.1} parent=63 // pred_check
          %p1844 = pneg %p179
        $region66: #{tpu_custom_call.1} parent=63 // pred_check_branch
          %1846 = sbr.rel (%p1844) target = $region68
        $region67: #{tpu_custom_call.1} parent=63 // pred_region
          %s1847 = sand.u32 %s164, 1
          %s1848 = scalar_lea.sflag [#allocation4], %s1847
          %s1849 = sand.u32 %s164, 1
          %s1850 = smul.addr %s1849, 16
          %s1851 = scalar_lea.vmem [#allocation8], %s1850
          %1853 = dma.done %s1848, 256
        $region68: #{tpu_custom_call.1} parent=63 // pred_fallthru
          _
      $region64: #{tpu_custom_call.1} parent=5 // pred_fallthru
        _
    $region6: #{tpu_custom_call.1} parent=1 // loop_footer
      %s23 = sadd.s32 1, %s19
    $region7: #{tpu_custom_call.1} parent=1 // loop_footer_branch
      %18 = sbr.rel target = $region3
    $region8: #{tpu_custom_call.1} parent=1 // loop_exit
      _
    %1854 = vsyncpa [#allocation3], 1
    %s1855 = scalar_lea.sflag [#allocation3], 1
    %1856 = vsyncpa %s1855, 1
    %1857 = vsyncpa [#allocation6], 1
    %1858 = vsyncpa [#allocation4], 1
    %s1859 = scalar_lea.sflag [#allocation4], 1
    %1860 = vsyncpa %s1859, 1

</llo_original>
